<compile_context>
chip_gen: v7x
topology: tpu7x:2x2x1
jax: 0.10.0
libtpu: 0.0.40
codegen_flags: <defaults>
</compile_context>

<pallas_src>
import functools

import jax
import jax.numpy as jnp
from jax.experimental import pallas as pl
from jax.experimental.pallas import tpu as pltpu

_MIB = 1024 * 1024


def _round_up(a, b):
    return (a + b - 1) // b * b


def _vmem_budget_bytes():
    """Physical VMEM per core minus headroom (conservative 64 MiB fallback)."""
    try:
        cap = int(pltpu.get_tpu_info().vmem_capacity_bytes)
    except Exception:
        cap = 64 * _MIB
    return max(cap - 8 * _MIB, 24 * _MIB)


def _pick_seq_tile(T, target):
    if T <= target:
        return T
    for t in (target, 256, 128, 64, 32, 16, 8):
        if t <= target and T % t == 0:
            return t
    return T


# ---------------------------------------------------------------------------
# Kernel 1: flash-style fused RMSNorm -> causal MHA -> out proj -> residual
#   grid = (batch, q tiles, kv tiles); kv axis is the reduction ("arbitrary").
# ---------------------------------------------------------------------------
def _attn_kernel(xq_ref, xk_ref, g_ref, wq_ref, bq_ref, wkv_ref, bkv_ref,
                 wo_ref, bo_ref, o_ref,
                 qn_ref, kvn_ref, m_ref, l_ref, acc_ref,
                 *, n_head, eps, tq, tk):
    D = qn_ref.shape[1]
    hs = D // n_head
    qi = pl.program_id(1)
    ki = pl.program_id(2)
    nk = pl.num_programs(2)

    @pl.when(ki == 0)
    def _init():
        # RMS norm of the query rows exactly as the torch module:
        #   w * x / (sqrt(mean(x^2)) + eps)   (eps OUTSIDE the sqrt)
        x = xq_ref[0].astype(jnp.float32)                          # (tq, D)
        ms = jnp.mean(x * x, axis=-1, keepdims=True)
        inv = 1.0 / (jnp.sqrt(ms) + eps)                           # (tq, 1)
        xn = (g_ref[...].astype(jnp.float32) * x) * inv
        q = jnp.dot(xn.astype(wq_ref.dtype), wq_ref[...],
                    preferred_element_type=jnp.float32) + bq_ref[...]
        # fold the 1/sqrt(head_size) softmax scale into q once
        qn_ref[...] = (q * (1.0 / float(hs) ** 0.5)).astype(qn_ref.dtype)
        m_ref[...] = jnp.full(m_ref.shape, -1e30, m_ref.dtype)
        l_ref[...] = jnp.zeros_like(l_ref)
        acc_ref[...] = jnp.zeros_like(acc_ref)

    # Skip KV tiles that are strictly in the future of every query row.
    @pl.when(ki * tk <= qi * tq + (tq - 1))
    def _update():
        xk = xk_ref[0].astype(jnp.float32)                         # (tk, D)
        ms = jnp.mean(xk * xk, axis=-1, keepdims=True)
        inv = 1.0 / (jnp.sqrt(ms) + eps)
        xkn = (g_ref[...].astype(jnp.float32) * xk) * inv
        # fused K|V projection: one MXU pass with N = 2*D
        kv = jnp.dot(xkn.astype(wkv_ref.dtype), wkv_ref[...],
                     preferred_element_type=jnp.float32) + bkv_ref[...]
        kvn_ref[...] = kv.astype(kvn_ref.dtype)                    # (tk, 2*D)

        row = qi * tq + jax.lax.broadcasted_iota(jnp.int32, (tq, tk), 0)
        col = ki * tk + jax.lax.broadcasted_iota(jnp.int32, (tq, tk), 1)
        causal = row >= col

        for h in range(n_head):            # static unroll; n_head is small
            sl = slice(h * hs, (h + 1) * hs)
            qh = qn_ref[:, sl]                                     # (tq, hs)
            kh = kvn_ref[:, sl]                                    # (tk, hs)
            vh = kvn_ref[:, D + h * hs:D + (h + 1) * hs]           # (tk, hs)
            s = jax.lax.dot_general(qh, kh, (((1,), (1,)), ((), ())),
                                    preferred_element_type=jnp.float32)
            s = jnp.where(causal, s, -1e30)
            m_prev = m_ref[h]                                      # (tq, 1)
            m_new = jnp.maximum(m_prev, jnp.max(s, axis=-1, keepdims=True))
            a = jnp.exp(m_prev - m_new)
            p = jnp.where(causal, jnp.exp(s - m_new), 0.0)         # unnormalized
            l_ref[h] = a * l_ref[h] + jnp.sum(p, axis=-1, keepdims=True)
            acc_ref[:, sl] = a * acc_ref[:, sl] + jnp.dot(
                p.astype(vh.dtype), vh, preferred_element_type=jnp.float32)
            m_ref[h] = m_new

    @pl.when(ki == nk - 1)
    def _finalize():
        # deferred softmax normalization: one multiply per head
        for h in range(n_head):
            sl = slice(h * hs, (h + 1) * hs)
            acc_ref[:, sl] = acc_ref[:, sl] * (1.0 / l_ref[h])
        # single full-depth (K = D) output projection
        y = acc_ref[...].astype(wo_ref.dtype)
        out = jnp.dot(y, wo_ref[...],
                      preferred_element_type=jnp.float32) + bo_ref[...]
        # TODO(synk): nn.Dropout is identity in eval mode; training-time
        #             dropout (pltpu.prng_* + mask/scale) is not implemented.
        o_ref[0] = (xq_ref[0].astype(jnp.float32) + out).astype(o_ref.dtype)


def attention_forward(x, g, wqkv, bqkv, wo, bo, *, n_head, eps=1e-6,
                      seq_tile=256):
    """x: (B, T, D).  Returns x + attn(rms_norm(x))."""
    B, T, D = x.shape
    assert D % n_head == 0
    assert wqkv.shape == (D, 3 * D)

    # split the fused qkv weight: q kept separate (needed per q tile),
    # k|v kept fused (one N=2D matmul per kv tile).
    wq, wkv = wqkv[:, :D], wqkv[:, D:]
    bq, bkv = bqkv[:, :D], bqkv[:, D:]

    tq = _pick_seq_tile(T, seq_tile)
    tk = tq
    nq, nk = T // tq, T // tk

    w_dtype = wqkv.dtype
    bpe_x = jnp.dtype(x.dtype).itemsize
    bpe_w = jnp.dtype(w_dtype).itemsize
    # VMEM footprint: resident weights (double-buffered), io tiles, scratch,
    # and live f32 temporaries inside one grid step.
    est = (2 * (4 * D * D + 6 * D) * bpe_w
           + 2 * (2 * tq + tk) * D * bpe_x
           + (tq * D + 2 * tk * D) * bpe_w
           + (tq * D + 2 * n_head * tq) * 4
           + (3 * tk * D + 2 * tq * tk + 2 * tq * D) * 4)
    budget = _vmem_budget_bytes()
    vmem_limit = int(min(max(est * 1.3, 32 * _MIB), budget))
    # TODO(synk): for very large D the resident D x D weights themselves
    #             exceed VMEM; that case needs weight streaming over D tiles.

    def const(shape):
        return pl.BlockSpec(shape, lambda b, i, k: (0,) * len(shape))

    kernel = functools.partial(_attn_kernel, n_head=n_head, eps=eps,
                               tq=tq, tk=tk)
    return pl.pallas_call(
        kernel,
        out_shape=jax.ShapeDtypeStruct((B, T, D), x.dtype),
        grid_spec=pltpu.PrefetchScalarGridSpec(
            num_scalar_prefetch=0,
            grid=(B, nq, nk),
            in_specs=[
                pl.BlockSpec((1, tq, D), lambda b, i, k: (b, i, 0)),  # x (q rows)
                pl.BlockSpec((1, tk, D), lambda b, i, k: (b, k, 0)),  # x (kv rows)
                const((1, D)),                                        # norm weight
                const((D, D)), const((1, D)),                         # Wq, bq
                const((D, 2 * D)), const((1, 2 * D)),                 # W_kv, b_kv
                const((D, D)), const((1, D)),                         # Wo, bo
            ],
            out_specs=pl.BlockSpec((1, tq, D), lambda b, i, k: (b, i, 0)),
            scratch_shapes=[
                pltpu.VMEM((tq, D), w_dtype),               # scaled q (per q tile)
                pltpu.VMEM((tk, 2 * D), w_dtype),           # projected k|v tile
                pltpu.VMEM((n_head, tq, 1), jnp.float32),   # running max / head
                pltpu.VMEM((n_head, tq, 1), jnp.float32),   # running denom / head
                pltpu.VMEM((tq, D), jnp.float32),           # unnormalized output
            ],
        ),
        compiler_params=pltpu.CompilerParams(
            dimension_semantics=("parallel", "parallel", "arbitrary"),
            vmem_limit_bytes=vmem_limit),
    )(x, x, g, wq, bq, wkv, bkv, wo, bo)


# ---------------------------------------------------------------------------
# Kernel 2: fused RMSNorm -> gated MLP (relu(gate)*up -> down) -> residual
#   grid = (token tiles, hidden tiles); hidden axis is the reduction with an
#   f32 accumulator (pl.when init/finalize).
# ---------------------------------------------------------------------------
def _mlp_kernel(x_ref, g_ref, wg_ref, bg_ref, wu_ref, bu_ref, wd_ref, bd_ref,
                o_ref, xn_ref, acc_ref, *, eps):
    j = pl.program_id(1)

    @pl.when(j == 0)
    def _init():
        x = x_ref[...].astype(jnp.float32)
        ms = jnp.mean(x * x, axis=-1, keepdims=True)
        inv = 1.0 / (jnp.sqrt(ms) + eps)
        xn_ref[...] = ((g_ref[...].astype(jnp.float32) * x) * inv
                       ).astype(xn_ref.dtype)
        acc_ref[...] = jnp.zeros_like(acc_ref)

    xn = xn_ref[...]                       # already in the weight dtype
    gate = jnp.dot(xn, wg_ref[...], preferred_element_type=jnp.float32) + bg_ref[...]
    up = jnp.dot(xn, wu_ref[...], preferred_element_type=jnp.float32) + bu_ref[...]
    h = jnp.maximum(gate, 0.0) * up                           # (tm, th), f32
    acc_ref[...] += jnp.dot(h.astype(wd_ref.dtype), wd_ref[...],
                            preferred_element_type=jnp.float32)

    @pl.when(j == pl.num_programs(1) - 1)
    def _finalize():
        # residual + down-proj bias. nn.Dropout is identity in eval mode.
        o_ref[...] = (x_ref[...].astype(jnp.float32) + acc_ref[...]
                      + bd_ref[...]).astype(o_ref.dtype)


def mlp_forward(x2d, g, wg, bg, wu, bu, wd, bd, *, eps=1e-6, tm=256, th=512):
    """x2d: (M, D) tokens.  Returns x2d + mlp(rms_norm(x2d))."""
    M, D = x2d.shape
    H = wg.shape[1]

    w_dtype = wg.dtype
    bpe_x = jnp.dtype(x2d.dtype).itemsize
    bpe_w = jnp.dtype(w_dtype).itemsize

    # Token tile: 256 fills a v6e/v7x 2x256x256 MXU pass; clamp + zero-pad
    # small/ragged M instead of asserting divisibility.
    tm = max(8, min(tm, _round_up(M, 8)))
    # Hidden tile: stream the 4*D hidden dim so weight tiles + the (tm, th)
    # intermediates stay inside VMEM.
    th = min(th, H)
    if H % th != 0 or (th % 128 != 0 and th != H):
        th = H

    def est(tm_, th_):
        return (2 * (3 * D * th_ + 2 * th_ + 2 * D) * bpe_w   # streamed W/b + consts (2 bufs)
                + 2 * 2 * tm_ * D * bpe_x                     # x / out tiles (2 bufs)
                + tm_ * D * (bpe_w + 4)                       # xn + f32 accumulator
                + 3 * tm_ * th_ * 4)                          # gate / up / h live f32

    # Auto-shrink the tiles if the estimate exceeds the chip budget (v7x 64 MiB).
    budget = _vmem_budget_bytes()
    while est(tm, th) > budget and th % 256 == 0 and th > 128:
        th //= 2                    # H % (th//2) == 0 whenever H % th == 0
    while est(tm, th) > budget and tm % 16 == 0 and tm > 128:
        tm //= 2
    vmem_limit = int(min(max(est(tm, th) * 1.3, 32 * _MIB), budget))

    Mp = _round_up(M, tm)
    if Mp != M:
        x2d = jnp.pad(x2d, ((0, Mp - M), (0, 0)))
    grid = (Mp // tm, H // th)

    out = pl.pallas_call(
        functools.partial(_mlp_kernel, eps=eps),
        out_shape=jax.ShapeDtypeStruct((Mp, D), x2d.dtype),
        grid_spec=pltpu.PrefetchScalarGridSpec(
            num_scalar_prefetch=0,
            grid=grid,
            in_specs=[
                pl.BlockSpec((tm, D), lambda i, j: (i, 0)),    # x tile
                pl.BlockSpec((1, D), lambda i, j: (0, 0)),     # norm weight
                pl.BlockSpec((D, th), lambda i, j: (0, j)),    # gate W tile
                pl.BlockSpec((1, th), lambda i, j: (0, j)),    # gate b tile
                pl.BlockSpec((D, th), lambda i, j: (0, j)),    # up W tile
                pl.BlockSpec((1, th), lambda i, j: (0, j)),    # up b tile
                pl.BlockSpec((th, D), lambda i, j: (j, 0)),    # down W tile
                pl.BlockSpec((1, D), lambda i, j: (0, 0)),     # down bias
            ],
            out_specs=pl.BlockSpec((tm, D), lambda i, j: (i, 0)),
            scratch_shapes=[pltpu.VMEM((tm, D), w_dtype),      # xn cache (weight dtype)
                            pltpu.VMEM((tm, D), jnp.float32)], # f32 accumulator
        ),
        compiler_params=pltpu.CompilerParams(
            dimension_semantics=("parallel", "arbitrary"),
            vmem_limit_bytes=vmem_limit),
    )(x2d, g, wg, bg, wu, bu, wd, bd)
    return out[:M]


# ---------------------------------------------------------------------------
# Block forward = residual attention + residual MLP (shared RMS norm weight)
# ---------------------------------------------------------------------------
def block_forward(x, params, *, n_head, eps=1e-6, seq_tile=256, tm=256, th=512):
    B, T, D = x.shape
    y = attention_forward(x, params["norm_w"], params["wqkv"], params["bqkv"],
                          params["wo"], params["bo"],
                          n_head=n_head, eps=eps, seq_tile=seq_tile)
    # TODO(synk): fusing attention + MLP into one pallas_call would save one
    #             HBM round-trip of the (B, T, D) activations.
    out = mlp_forward(y.reshape(B * T, D), params["norm_w"],
                      params["wg"], params["bg"], params["wu"], params["bu"],
                      params["wd"], params["bd"], eps=eps, tm=tm, th=th)
    return out.reshape(B, T, D)


# ---------------------------------------------------------------------------
# Pure-JAX reference (mirrors the PyTorch Block in eval mode)
# ---------------------------------------------------------------------------
def reference_block(x, params, *, n_head, eps=1e-6):
    g = params["norm_w"]

    def rms_norm(h):
        h = h.astype(jnp.float32)
        return g * h / (jnp.sqrt(jnp.mean(h * h, axis=-1, keepdims=True)) + eps)

    B, T, D = x.shape
    hs = D // n_head
    xn = rms_norm(x)
    qkv = xn @ params["wqkv"] + params["bqkv"]
    q, k, v = jnp.split(qkv, 3, axis=-1)
    q = q.reshape(B, T, n_head, hs).transpose(0, 2, 1, 3)
    k = k.reshape(B, T, n_head, hs).transpose(0, 2, 1, 3)
    v = v.reshape(B, T, n_head, hs).transpose(0, 2, 1, 3)
    s = jnp.einsum("bhtd,bhsd->bhts", q, k) / float(hs) ** 0.5
    causal = jnp.tril(jnp.ones((T, T), dtype=bool))
    s = jnp.where(causal, s, -1e30)
    p = jax.nn.softmax(s, axis=-1)
    y = jnp.einsum("bhts,bhsd->bhtd", p, v).transpose(0, 2, 1, 3).reshape(B, T, D)
    x = x + y @ params["wo"] + params["bo"]
    xn2 = rms_norm(x)
    h = jnp.maximum(xn2 @ params["wg"] + params["bg"], 0.0) * (xn2 @ params["wu"] + params["bu"])
    return x + h @ params["wd"] + params["bd"]


if __name__ == "__main__":
    # Small config consistent with the module: batch=2, seq=8, n_embed=32,
    # n_head=4, bias=True, dropout=0 (eval mode).
    B, T, D, n_head = 2, 8, 32, 4
    H = 4 * D
    eps = 1e-6

    key = jax.random.PRNGKey(0)
    ks = jax.random.split(key, 11)

    def linear_init(kw, kb, fan_in, w_shape, b_shape):
        s = 1.0 / float(fan_in) ** 0.5
        w = jax.random.uniform(kw, w_shape, minval=-s, maxval=s, dtype=jnp.float32)
        b = jax.random.uniform(kb, b_shape, minval=-s, maxval=s, dtype=jnp.float32)
        return w, b

    x = jax.random.normal(ks[0], (B, T, D), dtype=jnp.float32)

    wqkv, bqkv = linear_init(ks[1], ks[2], D, (D, 3 * D), (1, 3 * D))
    wo, bo = linear_init(ks[3], ks[4], D, (D, D), (1, D))
    wg, bg = linear_init(ks[5], ks[6], D, (D, H), (1, H))
    wu, bu = linear_init(ks[7], ks[8], D, (D, H), (1, H))
    wd, bd = linear_init(ks[9], ks[10], H, (H, D), (1, D))

    params = dict(norm_w=jnp.ones((1, D), jnp.float32),
                  wqkv=wqkv, bqkv=bqkv, wo=wo, bo=bo,
                  wg=wg, bg=bg, wu=wu, bu=bu, wd=wd, bd=bd)

    out = block_forward(x, params, n_head=n_head, eps=eps)
    jax.block_until_ready(out)

    ref = reference_block(x, params, n_head=n_head, eps=eps)
    max_err = float(jnp.max(jnp.abs(out - ref)))
    assert out.shape == ref.shape
    assert jnp.allclose(out, ref, atol=1e-4, rtol=1e-4), (
        "mismatch vs reference, max abs err = %g" % max_err)

    print("KERNEL_OK")
</pallas_src>

<mosaic_0001>
module attributes {stable_mosaic.version = 11 : i64} {
  func.func @_attn_kernel(%arg0: i32, %arg1: i32, %arg2: i32, %arg3: memref<1x8x32xf32, #tpu.memory_space<vmem>>, %arg4: memref<1x8x32xf32, #tpu.memory_space<vmem>>, %arg5: memref<1x32xf32, #tpu.memory_space<vmem>>, %arg6: memref<32x32xf32, #tpu.memory_space<vmem>>, %arg7: memref<1x32xf32, #tpu.memory_space<vmem>>, %arg8: memref<32x64xf32, #tpu.memory_space<vmem>>, %arg9: memref<1x64xf32, #tpu.memory_space<vmem>>, %arg10: memref<32x32xf32, #tpu.memory_space<vmem>>, %arg11: memref<1x32xf32, #tpu.memory_space<vmem>>, %arg12: memref<1x8x32xf32, #tpu.memory_space<vmem>>, %arg13: memref<8x32xf32, #tpu.memory_space<vmem>>, %arg14: memref<8x64xf32, #tpu.memory_space<vmem>>, %arg15: memref<4x8x1xf32, #tpu.memory_space<vmem>>, %arg16: memref<4x8x1xf32, #tpu.memory_space<vmem>>, %arg17: memref<8x32xf32, #tpu.memory_space<vmem>>) attributes {dimension_semantics = [#tpu.dimension_semantics<parallel>, #tpu.dimension_semantics<parallel>, #tpu.dimension_semantics<arbitrary>], iteration_bounds = array<i64: 2, 1, 1>, scalar_prefetch = 0 : i64, scratch_operands = 5 : i64, tpu.core_type = #tpu.core_type<tc>, window_params = [{transform_indices = @transform_0, window_bounds = array<i64: 1, 8, 32>}, {transform_indices = @transform_1, window_bounds = array<i64: 1, 8, 32>}, {pipeline_mode = #tpu.pipeline_mode<synchronous>, transform_indices = @transform_2, window_bounds = array<i64: 1, 32>}, {pipeline_mode = #tpu.pipeline_mode<synchronous>, transform_indices = @transform_3, window_bounds = array<i64: 32, 32>}, {pipeline_mode = #tpu.pipeline_mode<synchronous>, transform_indices = @transform_4, window_bounds = array<i64: 1, 32>}, {pipeline_mode = #tpu.pipeline_mode<synchronous>, transform_indices = @transform_5, window_bounds = array<i64: 32, 64>}, {pipeline_mode = #tpu.pipeline_mode<synchronous>, transform_indices = @transform_6, window_bounds = array<i64: 1, 64>}, {pipeline_mode = #tpu.pipeline_mode<synchronous>, transform_indices = @transform_7, window_bounds = array<i64: 32, 32>}, {pipeline_mode = #tpu.pipeline_mode<synchronous>, transform_indices = @transform_8, window_bounds = array<i64: 1, 32>}, {transform_indices = @transform_9, window_bounds = array<i64: 1, 8, 32>}]} {
    %c0_i32 = arith.constant 0 : i32
    %0 = arith.cmpi eq, %arg2, %c0_i32 : i32
    %1 = arith.extui %0 : i1 to i32
    %c0_i32_0 = arith.constant 0 : i32
    %2 = arith.cmpi ne, %1, %c0_i32_0 : i32
    scf.if %2 {
      %c0 = arith.constant 0 : index
      %c0_5 = arith.constant 0 : index
      %c0_6 = arith.constant 0 : index
      %12 = vector.load %arg3[%c0, %c0_5, %c0_6] : memref<1x8x32xf32, #tpu.memory_space<vmem>>, vector<1x8x32xf32>
      %13 = vector.shape_cast %12 : vector<1x8x32xf32> to vector<8x32xf32>
      %14 = arith.mulf %13, %13 : vector<8x32xf32>
      %cst = arith.constant dense<0.000000e+00> : vector<8xf32>
      %15 = vector.multi_reduction <add>, %14, %cst [1] : vector<8x32xf32> to vector<8xf32>
      %16 = vector.shape_cast %15 : vector<8xf32> to vector<8x1xf32>
      %cst_7 = arith.constant 3.200000e+01 : f32
      %17 = vector.broadcast %cst_7 : f32 to vector<8x1xf32>
      %18 = arith.divf %16, %17 : vector<8x1xf32>
      %19 = math.sqrt %18 : vector<8x1xf32>
      %cst_8 = arith.constant 9.99999997E-7 : f32
      %20 = vector.broadcast %cst_8 : f32 to vector<8x1xf32>
      %21 = arith.addf %19, %20 : vector<8x1xf32>
      %cst_9 = arith.constant 1.000000e+00 : f32
      %22 = vector.broadcast %cst_9 : f32 to vector<8x1xf32>
      %23 = arith.divf %22, %21 : vector<8x1xf32>
      %c0_10 = arith.constant 0 : index
      %c0_11 = arith.constant 0 : index
      %24 = vector.load %arg5[%c0_10, %c0_11] : memref<1x32xf32, #tpu.memory_space<vmem>>, vector<1x32xf32>
      %25 = vector.broadcast %24 : vector<1x32xf32> to vector<8x32xf32>
      %26 = arith.mulf %25, %13 : vector<8x32xf32>
      %27 = vector.broadcast %23 : vector<8x1xf32> to vector<8x32xf32>
      %28 = arith.mulf %26, %27 : vector<8x32xf32>
      %c0_12 = arith.constant 0 : index
      %c0_13 = arith.constant 0 : index
      %29 = vector.load %arg6[%c0_12, %c0_13] : memref<32x32xf32, #tpu.memory_space<vmem>>, vector<32x32xf32>
      %cst_14 = arith.constant dense<0.000000e+00> : vector<8x32xf32>
      %30 = tpu.matmul %28, %29, %cst_14 {dimension_numbers = #tpu.dot_dimension_numbers<[1], [0], [0], [1], [0, 0, 1, 1], [], []>} : vector<8x32xf32>, vector<32x32xf32>, vector<8x32xf32> -> vector<8x32xf32>
      %c0_15 = arith.constant 0 : index
      %c0_16 = arith.constant 0 : index
      %31 = vector.load %arg7[%c0_15, %c0_16] : memref<1x32xf32, #tpu.memory_space<vmem>>, vector<1x32xf32>
      %32 = vector.broadcast %31 : vector<1x32xf32> to vector<8x32xf32>
      %33 = arith.addf %30, %32 : vector<8x32xf32>
      %cst_17 = arith.constant 0.353553385 : f32
      %34 = vector.broadcast %cst_17 : f32 to vector<8x32xf32>
      %35 = arith.mulf %33, %34 : vector<8x32xf32>
      %c0_18 = arith.constant 0 : index
      %c0_19 = arith.constant 0 : index
      %36 = vector.load %arg13[%c0_18, %c0_19] : memref<8x32xf32, #tpu.memory_space<vmem>>, vector<8x32xf32>
      tpu.vector_store %arg13[%c0_18, %c0_19], %35 {strides = array<i32>} : memref<8x32xf32, #tpu.memory_space<vmem>>, vector<8x32xf32>,
      %cst_20 = arith.constant -1.000000e+30 : f32
      %37 = vector.broadcast %cst_20 : f32 to vector<4x8x1xf32>
      %c0_21 = arith.constant 0 : index
      %c0_22 = arith.constant 0 : index
      %c0_23 = arith.constant 0 : index
      %38 = vector.load %arg15[%c0_21, %c0_22, %c0_23] : memref<4x8x1xf32, #tpu.memory_space<vmem>>, vector<4x8x1xf32>
      tpu.vector_store %arg15[%c0_21, %c0_22, %c0_23], %37 {strides = array<i32>} : memref<4x8x1xf32, #tpu.memory_space<vmem>>, vector<4x8x1xf32>,
      %cst_24 = arith.constant 0.000000e+00 : f32
      %39 = vector.broadcast %cst_24 : f32 to vector<4x8x1xf32>
      %c0_25 = arith.constant 0 : index
      %c0_26 = arith.constant 0 : index
      %c0_27 = arith.constant 0 : index
      %40 = vector.load %arg16[%c0_25, %c0_26, %c0_27] : memref<4x8x1xf32, #tpu.memory_space<vmem>>, vector<4x8x1xf32>
      tpu.vector_store %arg16[%c0_25, %c0_26, %c0_27], %39 {strides = array<i32>} : memref<4x8x1xf32, #tpu.memory_space<vmem>>, vector<4x8x1xf32>,
      %cst_28 = arith.constant 0.000000e+00 : f32
      %41 = vector.broadcast %cst_28 : f32 to vector<8x32xf32>
      %c0_29 = arith.constant 0 : index
      %c0_30 = arith.constant 0 : index
      %42 = vector.load %arg17[%c0_29, %c0_30] : memref<8x32xf32, #tpu.memory_space<vmem>>, vector<8x32xf32>
      tpu.vector_store %arg17[%c0_29, %c0_30], %41 {strides = array<i32>} : memref<8x32xf32, #tpu.memory_space<vmem>>, vector<8x32xf32>,
    } else {
    }
    %c8_i32 = arith.constant 8 : i32
    %3 = arith.muli %arg2, %c8_i32 : i32
    %c8_i32_1 = arith.constant 8 : i32
    %4 = arith.muli %arg1, %c8_i32_1 : i32
    %c7_i32 = arith.constant 7 : i32
    %5 = arith.addi %4, %c7_i32 : i32
    %6 = arith.cmpi sle, %3, %5 : i32
    %7 = arith.extui %6 : i1 to i32
    %c0_i32_2 = arith.constant 0 : i32
    %8 = arith.cmpi ne, %7, %c0_i32_2 : i32
    scf.if %8 {
      %c0 = arith.constant 0 : index
      %c0_5 = arith.constant 0 : index
      %c0_6 = arith.constant 0 : index
      %12 = vector.load %arg4[%c0, %c0_5, %c0_6] : memref<1x8x32xf32, #tpu.memory_space<vmem>>, vector<1x8x32xf32>
      %13 = vector.shape_cast %12 : vector<1x8x32xf32> to vector<8x32xf32>
      %14 = arith.mulf %13, %13 : vector<8x32xf32>
      %cst = arith.constant dense<0.000000e+00> : vector<8xf32>
      %15 = vector.multi_reduction <add>, %14, %cst [1] : vector<8x32xf32> to vector<8xf32>
      %16 = vector.shape_cast %15 : vector<8xf32> to vector<8x1xf32>
      %cst_7 = arith.constant 3.200000e+01 : f32
      %17 = vector.broadcast %cst_7 : f32 to vector<8x1xf32>
      %18 = arith.divf %16, %17 : vector<8x1xf32>
      %19 = math.sqrt %18 : vector<8x1xf32>
      %cst_8 = arith.constant 9.99999997E-7 : f32
      %20 = vector.broadcast %cst_8 : f32 to vector<8x1xf32>
      %21 = arith.addf %19, %20 : vector<8x1xf32>
      %cst_9 = arith.constant 1.000000e+00 : f32
      %22 = vector.broadcast %cst_9 : f32 to vector<8x1xf32>
      %23 = arith.divf %22, %21 : vector<8x1xf32>
      %c0_10 = arith.constant 0 : index
      %c0_11 = arith.constant 0 : index
      %24 = vector.load %arg5[%c0_10, %c0_11] : memref<1x32xf32, #tpu.memory_space<vmem>>, vector<1x32xf32>
      %25 = vector.broadcast %24 : vector<1x32xf32> to vector<8x32xf32>
      %26 = arith.mulf %25, %13 : vector<8x32xf32>
      %27 = vector.broadcast %23 : vector<8x1xf32> to vector<8x32xf32>
      %28 = arith.mulf %26, %27 : vector<8x32xf32>
      %c0_12 = arith.constant 0 : index
      %c0_13 = arith.constant 0 : index
      %29 = vector.load %arg8[%c0_12, %c0_13] : memref<32x64xf32, #tpu.memory_space<vmem>>, vector<32x64xf32>
      %cst_14 = arith.constant dense<0.000000e+00> : vector<8x64xf32>
      %30 = tpu.matmul %28, %29, %cst_14 {dimension_numbers = #tpu.dot_dimension_numbers<[1], [0], [0], [1], [0, 0, 1, 1], [], []>} : vector<8x32xf32>, vector<32x64xf32>, vector<8x64xf32> -> vector<8x64xf32>
      %c0_15 = arith.constant 0 : index
      %c0_16 = arith.constant 0 : index
      %31 = vector.load %arg9[%c0_15, %c0_16] : memref<1x64xf32, #tpu.memory_space<vmem>>, vector<1x64xf32>
      %32 = vector.broadcast %31 : vector<1x64xf32> to vector<8x64xf32>
      %33 = arith.addf %30, %32 : vector<8x64xf32>
      %c0_17 = arith.constant 0 : index
      %c0_18 = arith.constant 0 : index
      %34 = vector.load %arg14[%c0_17, %c0_18] : memref<8x64xf32, #tpu.memory_space<vmem>>, vector<8x64xf32>
      tpu.vector_store %arg14[%c0_17, %c0_18], %33 {strides = array<i32>} : memref<8x64xf32, #tpu.memory_space<vmem>>, vector<8x64xf32>,
      %c8_i32_19 = arith.constant 8 : i32
      %35 = arith.muli %arg1, %c8_i32_19 : i32
      %36 = tpu.iota {dimensions = array<i32: 0>} : vector<8x8xi32>
      %37 = vector.broadcast %35 : i32 to vector<8x8xi32>
      %38 = arith.addi %37, %36 : vector<8x8xi32>
      %c8_i32_20 = arith.constant 8 : i32
      %39 = arith.muli %arg2, %c8_i32_20 : i32
      %40 = tpu.iota {dimensions = array<i32: 1>} : vector<8x8xi32>
      %41 = vector.broadcast %39 : i32 to vector<8x8xi32>
      %42 = arith.addi %41, %40 : vector<8x8xi32>
      %43 = arith.cmpi sge, %38, %42 : vector<8x8xi32>
      %c0_21 = arith.constant 0 : index
      %c0_22 = arith.constant 0 : index
      %44 = vector.load %arg13[%c0_21, %c0_22] : memref<8x32xf32, #tpu.memory_space<vmem>>, vector<8x8xf32>
      %c0_23 = arith.constant 0 : index
      %c0_24 = arith.constant 0 : index
      %45 = vector.load %arg14[%c0_23, %c0_24] : memref<8x64xf32, #tpu.memory_space<vmem>>, vector<8x8xf32>
      %c0_25 = arith.constant 0 : index
      %c32 = arith.constant 32 : index
      %46 = vector.load %arg14[%c0_25, %c32] : memref<8x64xf32, #tpu.memory_space<vmem>>, vector<8x8xf32>
      %cst_26 = arith.constant dense<0.000000e+00> : vector<8x8xf32>
      %47 = tpu.matmul %44, %45, %cst_26 {dimension_numbers = #tpu.dot_dimension_numbers<[1], [1], [0], [0], [0, 0, 1, 0], [], []>} : vector<8x8xf32>, vector<8x8xf32>, vector<8x8xf32> -> vector<8x8xf32>
      %cst_27 = arith.constant -1.000000e+30 : f32
      %48 = vector.broadcast %cst_27 : f32 to vector<8x8xf32>
      %49 = arith.select %43, %47, %48 : vector<8x8xi1>, vector<8x8xf32>
      %c0_28 = arith.constant 0 : index
      %c0_29 = arith.constant 0 : index
      %c0_30 = arith.constant 0 : index
      %50 = vector.load %arg15[%c0_28, %c0_29, %c0_30] : memref<4x8x1xf32, #tpu.memory_space<vmem>>, vector<1x8x1xf32>
      %51 = vector.shape_cast %50 : vector<1x8x1xf32> to vector<8x1xf32>
      %cst_31 = arith.constant dense<0xFF800000> : vector<8xf32>
      %52 = vector.multi_reduction <maximumf>, %49, %cst_31 [1] : vector<8x8xf32> to vector<8xf32>
      %53 = vector.shape_cast %52 : vector<8xf32> to vector<8x1xf32>
      %54 = arith.maximumf %51, %53 : vector<8x1xf32>
      %55 = arith.subf %51, %54 : vector<8x1xf32>
      %56 = math.exp %55 : vector<8x1xf32>
      %57 = vector.broadcast %54 : vector<8x1xf32> to vector<8x8xf32>
      %58 = arith.subf %49, %57 : vector<8x8xf32>
      %59 = math.exp %58 : vector<8x8xf32>
      %cst_32 = arith.constant 0.000000e+00 : f32
      %60 = vector.broadcast %cst_32 : f32 to vector<8x8xf32>
      %61 = arith.select %43, %59, %60 : vector<8x8xi1>, vector<8x8xf32>
      %c0_33 = arith.constant 0 : index
      %c0_34 = arith.constant 0 : index
      %c0_35 = arith.constant 0 : index
      %62 = vector.load %arg16[%c0_33, %c0_34, %c0_35] : memref<4x8x1xf32, #tpu.memory_space<vmem>>, vector<1x8x1xf32>
      %63 = vector.shape_cast %62 : vector<1x8x1xf32> to vector<8x1xf32>
      %64 = arith.mulf %56, %63 : vector<8x1xf32>
      %cst_36 = arith.constant dense<0.000000e+00> : vector<8xf32>
      %65 = vector.multi_reduction <add>, %61, %cst_36 [1] : vector<8x8xf32> to vector<8xf32>
      %66 = vector.shape_cast %65 : vector<8xf32> to vector<8x1xf32>
      %67 = arith.addf %64, %66 : vector<8x1xf32>
      %c0_37 = arith.constant 0 : index
      %c0_38 = arith.constant 0 : index
      %c0_39 = arith.constant 0 : index
      %68 = vector.load %arg16[%c0_37, %c0_38, %c0_39] : memref<4x8x1xf32, #tpu.memory_space<vmem>>, vector<1x8x1xf32>
      %69 = vector.shape_cast %68 : vector<1x8x1xf32> to vector<8x1xf32>
      %70 = vector.shape_cast %67 : vector<8x1xf32> to vector<1x8x1xf32>
      tpu.vector_store %arg16[%c0_37, %c0_38, %c0_39], %70 {strides = array<i32>} : memref<4x8x1xf32, #tpu.memory_space<vmem>>, vector<1x8x1xf32>,
      %c0_40 = arith.constant 0 : index
      %c0_41 = arith.constant 0 : index
      %71 = vector.load %arg17[%c0_40, %c0_41] : memref<8x32xf32, #tpu.memory_space<vmem>>, vector<8x8xf32>
      %72 = vector.broadcast %56 : vector<8x1xf32> to vector<8x8xf32>
      %73 = arith.mulf %72, %71 : vector<8x8xf32>
      %cst_42 = arith.constant dense<0.000000e+00> : vector<8x8xf32>
      %74 = tpu.matmul %61, %46, %cst_42 {dimension_numbers = #tpu.dot_dimension_numbers<[1], [0], [0], [1], [0, 0, 1, 1], [], []>} : vector<8x8xf32>, vector<8x8xf32>, vector<8x8xf32> -> vector<8x8xf32>
      %75 = arith.addf %73, %74 : vector<8x8xf32>
      %c0_43 = arith.constant 0 : index
      %c0_44 = arith.constant 0 : index
      %76 = vector.load %arg17[%c0_43, %c0_44] : memref<8x32xf32, #tpu.memory_space<vmem>>, vector<8x8xf32>
      tpu.vector_store %arg17[%c0_43, %c0_44], %75 {strides = array<i32>} : memref<8x32xf32, #tpu.memory_space<vmem>>, vector<8x8xf32>,
      %c0_45 = arith.constant 0 : index
      %c0_46 = arith.constant 0 : index
      %c0_47 = arith.constant 0 : index
      %77 = vector.load %arg15[%c0_45, %c0_46, %c0_47] : memref<4x8x1xf32, #tpu.memory_space<vmem>>, vector<1x8x1xf32>
      %78 = vector.shape_cast %77 : vector<1x8x1xf32> to vector<8x1xf32>
      %79 = vector.shape_cast %54 : vector<8x1xf32> to vector<1x8x1xf32>
      tpu.vector_store %arg15[%c0_45, %c0_46, %c0_47], %79 {strides = array<i32>} : memref<4x8x1xf32, #tpu.memory_space<vmem>>, vector<1x8x1xf32>,
      %c0_48 = arith.constant 0 : index
      %c8 = arith.constant 8 : index
      %80 = vector.load %arg13[%c0_48, %c8] : memref<8x32xf32, #tpu.memory_space<vmem>>, vector<8x8xf32>
      %c0_49 = arith.constant 0 : index
      %c8_50 = arith.constant 8 : index
      %81 = vector.load %arg14[%c0_49, %c8_50] : memref<8x64xf32, #tpu.memory_space<vmem>>, vector<8x8xf32>
      %c0_51 = arith.constant 0 : index
      %c40 = arith.constant 40 : index
      %82 = vector.load %arg14[%c0_51, %c40] : memref<8x64xf32, #tpu.memory_space<vmem>>, vector<8x8xf32>
      %cst_52 = arith.constant dense<0.000000e+00> : vector<8x8xf32>
      %83 = tpu.matmul %80, %81, %cst_52 {dimension_numbers = #tpu.dot_dimension_numbers<[1], [1], [0], [0], [0, 0, 1, 0], [], []>} : vector<8x8xf32>, vector<8x8xf32>, vector<8x8xf32> -> vector<8x8xf32>
      %cst_53 = arith.constant -1.000000e+30 : f32
      %84 = vector.broadcast %cst_53 : f32 to vector<8x8xf32>
      %85 = arith.select %43, %83, %84 : vector<8x8xi1>, vector<8x8xf32>
      %c1 = arith.constant 1 : index
      %c0_54 = arith.constant 0 : index
      %c0_55 = arith.constant 0 : index
      %86 = vector.load %arg15[%c1, %c0_54, %c0_55] : memref<4x8x1xf32, #tpu.memory_space<vmem>>, vector<1x8x1xf32>
      %87 = vector.shape_cast %86 : vector<1x8x1xf32> to vector<8x1xf32>
      %cst_56 = arith.constant dense<0xFF800000> : vector<8xf32>
      %88 = vector.multi_reduction <maximumf>, %85, %cst_56 [1] : vector<8x8xf32> to vector<8xf32>
      %89 = vector.shape_cast %88 : vector<8xf32> to vector<8x1xf32>
      %90 = arith.maximumf %87, %89 : vector<8x1xf32>
      %91 = arith.subf %87, %90 : vector<8x1xf32>
      %92 = math.exp %91 : vector<8x1xf32>
      %93 = vector.broadcast %90 : vector<8x1xf32> to vector<8x8xf32>
      %94 = arith.subf %85, %93 : vector<8x8xf32>
      %95 = math.exp %94 : vector<8x8xf32>
      %cst_57 = arith.constant 0.000000e+00 : f32
      %96 = vector.broadcast %cst_57 : f32 to vector<8x8xf32>
      %97 = arith.select %43, %95, %96 : vector<8x8xi1>, vector<8x8xf32>
      %c1_58 = arith.constant 1 : index
      %c0_59 = arith.constant 0 : index
      %c0_60 = arith.constant 0 : index
      %98 = vector.load %arg16[%c1_58, %c0_59, %c0_60] : memref<4x8x1xf32, #tpu.memory_space<vmem>>, vector<1x8x1xf32>
      %99 = vector.shape_cast %98 : vector<1x8x1xf32> to vector<8x1xf32>
      %100 = arith.mulf %92, %99 : vector<8x1xf32>
      %cst_61 = arith.constant dense<0.000000e+00> : vector<8xf32>
      %101 = vector.multi_reduction <add>, %97, %cst_61 [1] : vector<8x8xf32> to vector<8xf32>
      %102 = vector.shape_cast %101 : vector<8xf32> to vector<8x1xf32>
      %103 = arith.addf %100, %102 : vector<8x1xf32>
      %c1_62 = arith.constant 1 : index
      %c0_63 = arith.constant 0 : index
      %c0_64 = arith.constant 0 : index
      %104 = vector.load %arg16[%c1_62, %c0_63, %c0_64] : memref<4x8x1xf32, #tpu.memory_space<vmem>>, vector<1x8x1xf32>
      %105 = vector.shape_cast %104 : vector<1x8x1xf32> to vector<8x1xf32>
      %106 = vector.shape_cast %103 : vector<8x1xf32> to vector<1x8x1xf32>
      tpu.vector_store %arg16[%c1_62, %c0_63, %c0_64], %106 {strides = array<i32>} : memref<4x8x1xf32, #tpu.memory_space<vmem>>, vector<1x8x1xf32>,
      %c0_65 = arith.constant 0 : index
      %c8_66 = arith.constant 8 : index
      %107 = vector.load %arg17[%c0_65, %c8_66] : memref<8x32xf32, #tpu.memory_space<vmem>>, vector<8x8xf32>
      %108 = vector.broadcast %92 : vector<8x1xf32> to vector<8x8xf32>
      %109 = arith.mulf %108, %107 : vector<8x8xf32>
      %cst_67 = arith.constant dense<0.000000e+00> : vector<8x8xf32>
      %110 = tpu.matmul %97, %82, %cst_67 {dimension_numbers = #tpu.dot_dimension_numbers<[1], [0], [0], [1], [0, 0, 1, 1], [], []>} : vector<8x8xf32>, vector<8x8xf32>, vector<8x8xf32> -> vector<8x8xf32>
      %111 = arith.addf %109, %110 : vector<8x8xf32>
      %c0_68 = arith.constant 0 : index
      %c8_69 = arith.constant 8 : index
      %112 = vector.load %arg17[%c0_68, %c8_69] : memref<8x32xf32, #tpu.memory_space<vmem>>, vector<8x8xf32>
      tpu.vector_store %arg17[%c0_68, %c8_69], %111 {strides = array<i32>} : memref<8x32xf32, #tpu.memory_space<vmem>>, vector<8x8xf32>,
      %c1_70 = arith.constant 1 : index
      %c0_71 = arith.constant 0 : index
      %c0_72 = arith.constant 0 : index
      %113 = vector.load %arg15[%c1_70, %c0_71, %c0_72] : memref<4x8x1xf32, #tpu.memory_space<vmem>>, vector<1x8x1xf32>
      %114 = vector.shape_cast %113 : vector<1x8x1xf32> to vector<8x1xf32>
      %115 = vector.shape_cast %90 : vector<8x1xf32> to vector<1x8x1xf32>
      tpu.vector_store %arg15[%c1_70, %c0_71, %c0_72], %115 {strides = array<i32>} : memref<4x8x1xf32, #tpu.memory_space<vmem>>, vector<1x8x1xf32>,
      %c0_73 = arith.constant 0 : index
      %c16 = arith.constant 16 : index
      %116 = vector.load %arg13[%c0_73, %c16] : memref<8x32xf32, #tpu.memory_space<vmem>>, vector<8x8xf32>
      %c0_74 = arith.constant 0 : index
      %c16_75 = arith.constant 16 : index
      %117 = vector.load %arg14[%c0_74, %c16_75] : memref<8x64xf32, #tpu.memory_space<vmem>>, vector<8x8xf32>
      %c0_76 = arith.constant 0 : index
      %c48 = arith.constant 48 : index
      %118 = vector.load %arg14[%c0_76, %c48] : memref<8x64xf32, #tpu.memory_space<vmem>>, vector<8x8xf32>
      %cst_77 = arith.constant dense<0.000000e+00> : vector<8x8xf32>
      %119 = tpu.matmul %116, %117, %cst_77 {dimension_numbers = #tpu.dot_dimension_numbers<[1], [1], [0], [0], [0, 0, 1, 0], [], []>} : vector<8x8xf32>, vector<8x8xf32>, vector<8x8xf32> -> vector<8x8xf32>
      %cst_78 = arith.constant -1.000000e+30 : f32
      %120 = vector.broadcast %cst_78 : f32 to vector<8x8xf32>
      %121 = arith.select %43, %119, %120 : vector<8x8xi1>, vector<8x8xf32>
      %c2 = arith.constant 2 : index
      %c0_79 = arith.constant 0 : index
      %c0_80 = arith.constant 0 : index
      %122 = vector.load %arg15[%c2, %c0_79, %c0_80] : memref<4x8x1xf32, #tpu.memory_space<vmem>>, vector<1x8x1xf32>
      %123 = vector.shape_cast %122 : vector<1x8x1xf32> to vector<8x1xf32>
      %cst_81 = arith.constant dense<0xFF800000> : vector<8xf32>
      %124 = vector.multi_reduction <maximumf>, %121, %cst_81 [1] : vector<8x8xf32> to vector<8xf32>
      %125 = vector.shape_cast %124 : vector<8xf32> to vector<8x1xf32>
      %126 = arith.maximumf %123, %125 : vector<8x1xf32>
      %127 = arith.subf %123, %126 : vector<8x1xf32>
      %128 = math.exp %127 : vector<8x1xf32>
      %129 = vector.broadcast %126 : vector<8x1xf32> to vector<8x8xf32>
      %130 = arith.subf %121, %129 : vector<8x8xf32>
      %131 = math.exp %130 : vector<8x8xf32>
      %cst_82 = arith.constant 0.000000e+00 : f32
      %132 = vector.broadcast %cst_82 : f32 to vector<8x8xf32>
      %133 = arith.select %43, %131, %132 : vector<8x8xi1>, vector<8x8xf32>
      %c2_83 = arith.constant 2 : index
      %c0_84 = arith.constant 0 : index
      %c0_85 = arith.constant 0 : index
      %134 = vector.load %arg16[%c2_83, %c0_84, %c0_85] : memref<4x8x1xf32, #tpu.memory_space<vmem>>, vector<1x8x1xf32>
      %135 = vector.shape_cast %134 : vector<1x8x1xf32> to vector<8x1xf32>
      %136 = arith.mulf %128, %135 : vector<8x1xf32>
      %cst_86 = arith.constant dense<0.000000e+00> : vector<8xf32>
      %137 = vector.multi_reduction <add>, %133, %cst_86 [1] : vector<8x8xf32> to vector<8xf32>
      %138 = vector.shape_cast %137 : vector<8xf32> to vector<8x1xf32>
      %139 = arith.addf %136, %138 : vector<8x1xf32>
      %c2_87 = arith.constant 2 : index
      %c0_88 = arith.constant 0 : index
      %c0_89 = arith.constant 0 : index
      %140 = vector.load %arg16[%c2_87, %c0_88, %c0_89] : memref<4x8x1xf32, #tpu.memory_space<vmem>>, vector<1x8x1xf32>
      %141 = vector.shape_cast %140 : vector<1x8x1xf32> to vector<8x1xf32>
      %142 = vector.shape_cast %139 : vector<8x1xf32> to vector<1x8x1xf32>
      tpu.vector_store %arg16[%c2_87, %c0_88, %c0_89], %142 {strides = array<i32>} : memref<4x8x1xf32, #tpu.memory_space<vmem>>, vector<1x8x1xf32>,
      %c0_90 = arith.constant 0 : index
      %c16_91 = arith.constant 16 : index
      %143 = vector.load %arg17[%c0_90, %c16_91] : memref<8x32xf32, #tpu.memory_space<vmem>>, vector<8x8xf32>
      %144 = vector.broadcast %128 : vector<8x1xf32> to vector<8x8xf32>
      %145 = arith.mulf %144, %143 : vector<8x8xf32>
      %cst_92 = arith.constant dense<0.000000e+00> : vector<8x8xf32>
      %146 = tpu.matmul %133, %118, %cst_92 {dimension_numbers = #tpu.dot_dimension_numbers<[1], [0], [0], [1], [0, 0, 1, 1], [], []>} : vector<8x8xf32>, vector<8x8xf32>, vector<8x8xf32> -> vector<8x8xf32>
      %147 = arith.addf %145, %146 : vector<8x8xf32>
      %c0_93 = arith.constant 0 : index
      %c16_94 = arith.constant 16 : index
      %148 = vector.load %arg17[%c0_93, %c16_94] : memref<8x32xf32, #tpu.memory_space<vmem>>, vector<8x8xf32>
      tpu.vector_store %arg17[%c0_93, %c16_94], %147 {strides = array<i32>} : memref<8x32xf32, #tpu.memory_space<vmem>>, vector<8x8xf32>,
      %c2_95 = arith.constant 2 : index
      %c0_96 = arith.constant 0 : index
      %c0_97 = arith.constant 0 : index
      %149 = vector.load %arg15[%c2_95, %c0_96, %c0_97] : memref<4x8x1xf32, #tpu.memory_space<vmem>>, vector<1x8x1xf32>
      %150 = vector.shape_cast %149 : vector<1x8x1xf32> to vector<8x1xf32>
      %151 = vector.shape_cast %126 : vector<8x1xf32> to vector<1x8x1xf32>
      tpu.vector_store %arg15[%c2_95, %c0_96, %c0_97], %151 {strides = array<i32>} : memref<4x8x1xf32, #tpu.memory_space<vmem>>, vector<1x8x1xf32>,
      %c0_98 = arith.constant 0 : index
      %c24 = arith.constant 24 : index
      %152 = vector.load %arg13[%c0_98, %c24] : memref<8x32xf32, #tpu.memory_space<vmem>>, vector<8x8xf32>
      %c0_99 = arith.constant 0 : index
      %c24_100 = arith.constant 24 : index
      %153 = vector.load %arg14[%c0_99, %c24_100] : memref<8x64xf32, #tpu.memory_space<vmem>>, vector<8x8xf32>
      %c0_101 = arith.constant 0 : index
      %c56 = arith.constant 56 : index
      %154 = vector.load %arg14[%c0_101, %c56] : memref<8x64xf32, #tpu.memory_space<vmem>>, vector<8x8xf32>
      %cst_102 = arith.constant dense<0.000000e+00> : vector<8x8xf32>
      %155 = tpu.matmul %152, %153, %cst_102 {dimension_numbers = #tpu.dot_dimension_numbers<[1], [1], [0], [0], [0, 0, 1, 0], [], []>} : vector<8x8xf32>, vector<8x8xf32>, vector<8x8xf32> -> vector<8x8xf32>
      %cst_103 = arith.constant -1.000000e+30 : f32
      %156 = vector.broadcast %cst_103 : f32 to vector<8x8xf32>
      %157 = arith.select %43, %155, %156 : vector<8x8xi1>, vector<8x8xf32>
      %c3 = arith.constant 3 : index
      %c0_104 = arith.constant 0 : index
      %c0_105 = arith.constant 0 : index
      %158 = vector.load %arg15[%c3, %c0_104, %c0_105] : memref<4x8x1xf32, #tpu.memory_space<vmem>>, vector<1x8x1xf32>
      %159 = vector.shape_cast %158 : vector<1x8x1xf32> to vector<8x1xf32>
      %cst_106 = arith.constant dense<0xFF800000> : vector<8xf32>
      %160 = vector.multi_reduction <maximumf>, %157, %cst_106 [1] : vector<8x8xf32> to vector<8xf32>
      %161 = vector.shape_cast %160 : vector<8xf32> to vector<8x1xf32>
      %162 = arith.maximumf %159, %161 : vector<8x1xf32>
      %163 = arith.subf %159, %162 : vector<8x1xf32>
      %164 = math.exp %163 : vector<8x1xf32>
      %165 = vector.broadcast %162 : vector<8x1xf32> to vector<8x8xf32>
      %166 = arith.subf %157, %165 : vector<8x8xf32>
      %167 = math.exp %166 : vector<8x8xf32>
      %cst_107 = arith.constant 0.000000e+00 : f32
      %168 = vector.broadcast %cst_107 : f32 to vector<8x8xf32>
      %169 = arith.select %43, %167, %168 : vector<8x8xi1>, vector<8x8xf32>
      %c3_108 = arith.constant 3 : index
      %c0_109 = arith.constant 0 : index
      %c0_110 = arith.constant 0 : index
      %170 = vector.load %arg16[%c3_108, %c0_109, %c0_110] : memref<4x8x1xf32, #tpu.memory_space<vmem>>, vector<1x8x1xf32>
      %171 = vector.shape_cast %170 : vector<1x8x1xf32> to vector<8x1xf32>
      %172 = arith.mulf %164, %171 : vector<8x1xf32>
      %cst_111 = arith.constant dense<0.000000e+00> : vector<8xf32>
      %173 = vector.multi_reduction <add>, %169, %cst_111 [1] : vector<8x8xf32> to vector<8xf32>
      %174 = vector.shape_cast %173 : vector<8xf32> to vector<8x1xf32>
      %175 = arith.addf %172, %174 : vector<8x1xf32>
      %c3_112 = arith.constant 3 : index
      %c0_113 = arith.constant 0 : index
      %c0_114 = arith.constant 0 : index
      %176 = vector.load %arg16[%c3_112, %c0_113, %c0_114] : memref<4x8x1xf32, #tpu.memory_space<vmem>>, vector<1x8x1xf32>
      %177 = vector.shape_cast %176 : vector<1x8x1xf32> to vector<8x1xf32>
      %178 = vector.shape_cast %175 : vector<8x1xf32> to vector<1x8x1xf32>
      tpu.vector_store %arg16[%c3_112, %c0_113, %c0_114], %178 {strides = array<i32>} : memref<4x8x1xf32, #tpu.memory_space<vmem>>, vector<1x8x1xf32>,
      %c0_115 = arith.constant 0 : index
      %c24_116 = arith.constant 24 : index
      %179 = vector.load %arg17[%c0_115, %c24_116] : memref<8x32xf32, #tpu.memory_space<vmem>>, vector<8x8xf32>
      %180 = vector.broadcast %164 : vector<8x1xf32> to vector<8x8xf32>
      %181 = arith.mulf %180, %179 : vector<8x8xf32>
      %cst_117 = arith.constant dense<0.000000e+00> : vector<8x8xf32>
      %182 = tpu.matmul %169, %154, %cst_117 {dimension_numbers = #tpu.dot_dimension_numbers<[1], [0], [0], [1], [0, 0, 1, 1], [], []>} : vector<8x8xf32>, vector<8x8xf32>, vector<8x8xf32> -> vector<8x8xf32>
      %183 = arith.addf %181, %182 : vector<8x8xf32>
      %c0_118 = arith.constant 0 : index
      %c24_119 = arith.constant 24 : index
      %184 = vector.load %arg17[%c0_118, %c24_119] : memref<8x32xf32, #tpu.memory_space<vmem>>, vector<8x8xf32>
      tpu.vector_store %arg17[%c0_118, %c24_119], %183 {strides = array<i32>} : memref<8x32xf32, #tpu.memory_space<vmem>>, vector<8x8xf32>,
      %c3_120 = arith.constant 3 : index
      %c0_121 = arith.constant 0 : index
      %c0_122 = arith.constant 0 : index
      %185 = vector.load %arg15[%c3_120, %c0_121, %c0_122] : memref<4x8x1xf32, #tpu.memory_space<vmem>>, vector<1x8x1xf32>
      %186 = vector.shape_cast %185 : vector<1x8x1xf32> to vector<8x1xf32>
      %187 = vector.shape_cast %162 : vector<8x1xf32> to vector<1x8x1xf32>
      tpu.vector_store %arg15[%c3_120, %c0_121, %c0_122], %187 {strides = array<i32>} : memref<4x8x1xf32, #tpu.memory_space<vmem>>, vector<1x8x1xf32>,
    } else {
    }
    %c0_i32_3 = arith.constant 0 : i32
    %9 = arith.cmpi eq, %arg2, %c0_i32_3 : i32
    %10 = arith.extui %9 : i1 to i32
    %c0_i32_4 = arith.constant 0 : i32
    %11 = arith.cmpi ne, %10, %c0_i32_4 : i32
    scf.if %11 {
      %c0 = arith.constant 0 : index
      %c0_5 = arith.constant 0 : index
      %12 = vector.load %arg17[%c0, %c0_5] : memref<8x32xf32, #tpu.memory_space<vmem>>, vector<8x8xf32>
      %c0_6 = arith.constant 0 : index
      %c0_7 = arith.constant 0 : index
      %c0_8 = arith.constant 0 : index
      %13 = vector.load %arg16[%c0_6, %c0_7, %c0_8] : memref<4x8x1xf32, #tpu.memory_space<vmem>>, vector<1x8x1xf32>
      %14 = vector.shape_cast %13 : vector<1x8x1xf32> to vector<8x1xf32>
      %cst = arith.constant 1.000000e+00 : f32
      %15 = vector.broadcast %cst : f32 to vector<8x1xf32>
      %16 = arith.divf %15, %14 : vector<8x1xf32>
      %17 = vector.broadcast %16 : vector<8x1xf32> to vector<8x8xf32>
      %18 = arith.mulf %12, %17 : vector<8x8xf32>
      %c0_9 = arith.constant 0 : index
      %c0_10 = arith.constant 0 : index
      %19 = vector.load %arg17[%c0_9, %c0_10] : memref<8x32xf32, #tpu.memory_space<vmem>>, vector<8x8xf32>
      tpu.vector_store %arg17[%c0_9, %c0_10], %18 {strides = array<i32>} : memref<8x32xf32, #tpu.memory_space<vmem>>, vector<8x8xf32>,
      %c0_11 = arith.constant 0 : index
      %c8 = arith.constant 8 : index
      %20 = vector.load %arg17[%c0_11, %c8] : memref<8x32xf32, #tpu.memory_space<vmem>>, vector<8x8xf32>
      %c1 = arith.constant 1 : index
      %c0_12 = arith.constant 0 : index
      %c0_13 = arith.constant 0 : index
      %21 = vector.load %arg16[%c1, %c0_12, %c0_13] : memref<4x8x1xf32, #tpu.memory_space<vmem>>, vector<1x8x1xf32>
      %22 = vector.shape_cast %21 : vector<1x8x1xf32> to vector<8x1xf32>
      %cst_14 = arith.constant 1.000000e+00 : f32
      %23 = vector.broadcast %cst_14 : f32 to vector<8x1xf32>
      %24 = arith.divf %23, %22 : vector<8x1xf32>
      %25 = vector.broadcast %24 : vector<8x1xf32> to vector<8x8xf32>
      %26 = arith.mulf %20, %25 : vector<8x8xf32>
      %c0_15 = arith.constant 0 : index
      %c8_16 = arith.constant 8 : index
      %27 = vector.load %arg17[%c0_15, %c8_16] : memref<8x32xf32, #tpu.memory_space<vmem>>, vector<8x8xf32>
      tpu.vector_store %arg17[%c0_15, %c8_16], %26 {strides = array<i32>} : memref<8x32xf32, #tpu.memory_space<vmem>>, vector<8x8xf32>,
      %c0_17 = arith.constant 0 : index
      %c16 = arith.constant 16 : index
      %28 = vector.load %arg17[%c0_17, %c16] : memref<8x32xf32, #tpu.memory_space<vmem>>, vector<8x8xf32>
      %c2 = arith.constant 2 : index
      %c0_18 = arith.constant 0 : index
      %c0_19 = arith.constant 0 : index
      %29 = vector.load %arg16[%c2, %c0_18, %c0_19] : memref<4x8x1xf32, #tpu.memory_space<vmem>>, vector<1x8x1xf32>
      %30 = vector.shape_cast %29 : vector<1x8x1xf32> to vector<8x1xf32>
      %cst_20 = arith.constant 1.000000e+00 : f32
      %31 = vector.broadcast %cst_20 : f32 to vector<8x1xf32>
      %32 = arith.divf %31, %30 : vector<8x1xf32>
      %33 = vector.broadcast %32 : vector<8x1xf32> to vector<8x8xf32>
      %34 = arith.mulf %28, %33 : vector<8x8xf32>
      %c0_21 = arith.constant 0 : index
      %c16_22 = arith.constant 16 : index
      %35 = vector.load %arg17[%c0_21, %c16_22] : memref<8x32xf32, #tpu.memory_space<vmem>>, vector<8x8xf32>
      tpu.vector_store %arg17[%c0_21, %c16_22], %34 {strides = array<i32>} : memref<8x32xf32, #tpu.memory_space<vmem>>, vector<8x8xf32>,
      %c0_23 = arith.constant 0 : index
      %c24 = arith.constant 24 : index
      %36 = vector.load %arg17[%c0_23, %c24] : memref<8x32xf32, #tpu.memory_space<vmem>>, vector<8x8xf32>
      %c3 = arith.constant 3 : index
      %c0_24 = arith.constant 0 : index
      %c0_25 = arith.constant 0 : index
      %37 = vector.load %arg16[%c3, %c0_24, %c0_25] : memref<4x8x1xf32, #tpu.memory_space<vmem>>, vector<1x8x1xf32>
      %38 = vector.shape_cast %37 : vector<1x8x1xf32> to vector<8x1xf32>
      %cst_26 = arith.constant 1.000000e+00 : f32
      %39 = vector.broadcast %cst_26 : f32 to vector<8x1xf32>
      %40 = arith.divf %39, %38 : vector<8x1xf32>
      %41 = vector.broadcast %40 : vector<8x1xf32> to vector<8x8xf32>
      %42 = arith.mulf %36, %41 : vector<8x8xf32>
      %c0_27 = arith.constant 0 : index
      %c24_28 = arith.constant 24 : index
      %43 = vector.load %arg17[%c0_27, %c24_28] : memref<8x32xf32, #tpu.memory_space<vmem>>, vector<8x8xf32>
      tpu.vector_store %arg17[%c0_27, %c24_28], %42 {strides = array<i32>} : memref<8x32xf32, #tpu.memory_space<vmem>>, vector<8x8xf32>,
      %c0_29 = arith.constant 0 : index
      %c0_30 = arith.constant 0 : index
      %44 = vector.load %arg17[%c0_29, %c0_30] : memref<8x32xf32, #tpu.memory_space<vmem>>, vector<8x32xf32>
      %c0_31 = arith.constant 0 : index
      %c0_32 = arith.constant 0 : index
      %45 = vector.load %arg10[%c0_31, %c0_32] : memref<32x32xf32, #tpu.memory_space<vmem>>, vector<32x32xf32>
      %cst_33 = arith.constant dense<0.000000e+00> : vector<8x32xf32>
      %46 = tpu.matmul %44, %45, %cst_33 {dimension_numbers = #tpu.dot_dimension_numbers<[1], [0], [0], [1], [0, 0, 1, 1], [], []>} : vector<8x32xf32>, vector<32x32xf32>, vector<8x32xf32> -> vector<8x32xf32>
      %c0_34 = arith.constant 0 : index
      %c0_35 = arith.constant 0 : index
      %47 = vector.load %arg11[%c0_34, %c0_35] : memref<1x32xf32, #tpu.memory_space<vmem>>, vector<1x32xf32>
      %48 = vector.broadcast %47 : vector<1x32xf32> to vector<8x32xf32>
      %49 = arith.addf %46, %48 : vector<8x32xf32>
      %c0_36 = arith.constant 0 : index
      %c0_37 = arith.constant 0 : index
      %c0_38 = arith.constant 0 : index
      %50 = vector.load %arg3[%c0_36, %c0_37, %c0_38] : memref<1x8x32xf32, #tpu.memory_space<vmem>>, vector<1x8x32xf32>
      %51 = vector.shape_cast %50 : vector<1x8x32xf32> to vector<8x32xf32>
      %52 = arith.addf %51, %49 : vector<8x32xf32>
      %c0_39 = arith.constant 0 : index
      %c0_40 = arith.constant 0 : index
      %c0_41 = arith.constant 0 : index
      %53 = vector.load %arg12[%c0_39, %c0_40, %c0_41] : memref<1x8x32xf32, #tpu.memory_space<vmem>>, vector<1x8x32xf32>
      %54 = vector.shape_cast %53 : vector<1x8x32xf32> to vector<8x32xf32>
      %55 = vector.shape_cast %52 : vector<8x32xf32> to vector<1x8x32xf32>
      tpu.vector_store %arg12[%c0_39, %c0_40, %c0_41], %55 {strides = array<i32>} : memref<1x8x32xf32, #tpu.memory_space<vmem>>, vector<1x8x32xf32>,
    } else {
    }
    return
  }
  func.func @transform_0(%arg0: i32, %arg1: i32, %arg2: i32) -> (i32, i32, i32) {
    %c0_i32 = arith.constant 0 : i32
    %c0_i32_0 = arith.constant 0 : i32
    return %arg0, %arg1, %c0_i32 : i32, i32, i32
  }
  func.func @transform_1(%arg0: i32, %arg1: i32, %arg2: i32) -> (i32, i32, i32) {
    %c0_i32 = arith.constant 0 : i32
    %c0_i32_0 = arith.constant 0 : i32
    return %arg0, %arg2, %c0_i32 : i32, i32, i32
  }
  func.func @transform_2(%arg0: i32, %arg1: i32, %arg2: i32) -> (i32, i32) {
    %c0_i32 = arith.constant 0 : i32
    %c0_i32_0 = arith.constant 0 : i32
    %c0_i32_1 = arith.constant 0 : i32
    return %c0_i32, %c0_i32_0 : i32, i32
  }
  func.func @transform_3(%arg0: i32, %arg1: i32, %arg2: i32) -> (i32, i32) {
    %c0_i32 = arith.constant 0 : i32
    %c0_i32_0 = arith.constant 0 : i32
    %c0_i32_1 = arith.constant 0 : i32
    return %c0_i32, %c0_i32_0 : i32, i32
  }
  func.func @transform_4(%arg0: i32, %arg1: i32, %arg2: i32) -> (i32, i32) {
    %c0_i32 = arith.constant 0 : i32
    %c0_i32_0 = arith.constant 0 : i32
    %c0_i32_1 = arith.constant 0 : i32
    return %c0_i32, %c0_i32_0 : i32, i32
  }
  func.func @transform_5(%arg0: i32, %arg1: i32, %arg2: i32) -> (i32, i32) {
    %c0_i32 = arith.constant 0 : i32
    %c0_i32_0 = arith.constant 0 : i32
    %c0_i32_1 = arith.constant 0 : i32
    return %c0_i32, %c0_i32_0 : i32, i32
  }
  func.func @transform_6(%arg0: i32, %arg1: i32, %arg2: i32) -> (i32, i32) {
    %c0_i32 = arith.constant 0 : i32
    %c0_i32_0 = arith.constant 0 : i32
    %c0_i32_1 = arith.constant 0 : i32
    return %c0_i32, %c0_i32_0 : i32, i32
  }
  func.func @transform_7(%arg0: i32, %arg1: i32, %arg2: i32) -> (i32, i32) {
    %c0_i32 = arith.constant 0 : i32
    %c0_i32_0 = arith.constant 0 : i32
    %c0_i32_1 = arith.constant 0 : i32
    return %c0_i32, %c0_i32_0 : i32, i32
  }
  func.func @transform_8(%arg0: i32, %arg1: i32, %arg2: i32) -> (i32, i32) {
    %c0_i32 = arith.constant 0 : i32
    %c0_i32_0 = arith.constant 0 : i32
    %c0_i32_1 = arith.constant 0 : i32
    return %c0_i32, %c0_i32_0 : i32, i32
  }
  func.func @transform_9(%arg0: i32, %arg1: i32, %arg2: i32) -> (i32, i32, i32) {
    %c0_i32 = arith.constant 0 : i32
    %c0_i32_0 = arith.constant 0 : i32
    return %arg0, %arg1, %c0_i32 : i32, i32, i32
  }
}

</mosaic_0001>

<llo_original>
// kernel: tpu_custom_call.1
$region0: #{tpu_custom_call.1}
  #allocation0 [shape = 'u32[]', space=smem, size = 0x4, offset = 0x4, fixed_abs, tag = 'smem constant byte address 0x4 - core index']
  #allocation1 [shape = 'u32[144,128]{1,0:T(1,128)}', space=vmem, size = 0x12000, scoped, tag = 'internal scratch']
  #allocation2 [shape = 'f32[8,32]{1,0:T(8,128)}', space=vmem, size = 0x1000, scoped, tag = 'scratch operand']
  #allocation3 [shape = 'f32[8,64]{1,0:T(8,128)}', space=vmem, size = 0x1000, scoped, tag = 'scratch operand']
  #allocation4 [shape = 'f32[4,8,1]{2,1,0:T(8,128)}', space=vmem, size = 0x4000, scoped, tag = 'scratch operand']
  #allocation5 [shape = 'f32[4,8,1]{2,1,0:T(8,128)}', space=vmem, size = 0x4000, scoped, tag = 'scratch operand']
  #allocation6 [shape = 'f32[8,32]{1,0:T(8,128)}', space=vmem, size = 0x1000, scoped, tag = 'scratch operand']
  %s0 = inlined_call_operand.hbm [shape: f32[2,8,32], index: 0, kind: input, shape index: {}]
  %s1 = inlined_call_operand.hbm [shape: f32[2,8,32], index: 1, kind: input, shape index: {}]
  %s2 = inlined_call_operand.vmem [shape: f32[1,32], index: 2, kind: input, shape index: {}]
  %s3 = inlined_call_operand.hbm [shape: f32[32,32], index: 3, kind: input, shape index: {}]
  %s4 = inlined_call_operand.vmem [shape: f32[1,32], index: 4, kind: input, shape index: {}]
  %s5 = inlined_call_operand.hbm [shape: f32[32,64], index: 5, kind: input, shape index: {}]
  %s6 = inlined_call_operand.vmem [shape: f32[1,64], index: 6, kind: input, shape index: {}]
  %s7 = inlined_call_operand.hbm [shape: f32[32,32], index: 7, kind: input, shape index: {}]
  %s8 = inlined_call_operand.vmem [shape: f32[1,32], index: 8, kind: input, shape index: {}]
  %s9 = inlined_call_operand.hbm [shape: f32[2,8,32], index: 9, kind: output, shape index: {}]
  %s10 = sld [smem:[#allocation0]]
  $region101: #{tpu_custom_call.1} parent=0
    _
  %s12 = ssub.s32 1, %s10
  %s13 = scalar_select 0, %s12, %s10
  $region1: #{tpu_custom_call.1} parent=0
    #allocation7 [shape = 'u8[8192]{0}', space=vmem, size = 0x2000, scoped, tag = 'input window, operand 0']
    #allocation8 [shape = 's32[2]{0}', space=sflag, size = 0x8, scoped, tag = 'scoped memory for tpu_custom_call.1']
    #allocation9 [shape = 's32[2]{0}', space=sflag, size = 0x8, scoped, tag = 'scoped memory for tpu_custom_call.1']
    #allocation10 [shape = 'u8[8192]{0}', space=vmem, size = 0x2000, scoped, tag = 'input window, operand 1']
    #allocation11 [shape = 's32[2]{0}', space=sflag, size = 0x8, scoped, tag = 'scoped memory for tpu_custom_call.1']
    #allocation12 [shape = 'u8[16384]{0}', space=vmem, size = 0x4000, scoped, tag = 'input window, operand 3, single buffered']
    #allocation13 [shape = 'u8[16384]{0}', space=vmem, size = 0x4000, scoped, tag = 'input window, operand 5, single buffered']
    #allocation14 [shape = 's32[1]{0}', space=sflag, size = 0x4, scoped, tag = 'scoped memory for tpu_custom_call.1']
    #allocation15 [shape = 'u8[16384]{0}', space=vmem, size = 0x4000, scoped, tag = 'input window, operand 7, single buffered']
    #allocation16 [shape = 'u8[8192]{0}', space=vmem, size = 0x2000, scoped, tag = 'output window, operand 0']
    %14 = vsyncpa [#allocation8], 0
    %s15 = scalar_lea.sflag [#allocation8], 1
    %16 = vsyncpa %s15, 0
    %17 = vsyncpa [#allocation11], 0
    %s18 = scalar_lea.sflag [#allocation11], 1
    %19 = vsyncpa %s18, 0
    %20 = vsyncpa [#allocation14], 0
    %21 = vsyncpa [#allocation9], 0
    %s22 = scalar_lea.sflag [#allocation9], 1
    %23 = vsyncpa %s22, 0
    loop: start=0, step=1, limit=4
    $region2: #{tpu_custom_call.1} parent=1 // loop_pre_header
      _
    $region3: #{tpu_custom_call.1} parent=1 // loop_header
      %s25 = sphi 0, %s29
      %p26 = scmp.ge.s32.totalorder %s25, 4
      %s32 = sphi 0, %s51
      %s33 = sphi 0, %s47
      %s34 = sphi 0, %s43
      %s35 = sphi 0, %s32
      %s36 = sphi 0, %s33
      %s37 = sphi 0, %s34
      %s38 = sphi 0, %s35
      %s39 = sphi 0, %s36
      %s40 = sphi 0, %s37
      %s56 = sphi 0, %s58
      %s59 = sphi 0, %s56
      %s60 = sphi 0, %s59
      %s76 = sphi 0, %s60
      %s84 = sphi 0, %s86
      %s87 = sphi 0, %s84
      %s88 = sphi 0, %s87
      %s104 = sphi 0, %s88
      %s108 = sphi 0, %s108
      %s110 = sphi 0, %s108
      %s111 = sphi 0, %s110
      %s125 = sphi 0, %s111
      %s129 = sphi 0, %s129
      %s131 = sphi 0, %s129
      %s132 = sphi 0, %s131
      %s146 = sphi 0, %s132
      %s150 = sphi 0, %s150
      %s152 = sphi 0, %s150
      %s153 = sphi 0, %s152
      %s167 = sphi 0, %s153
      %s171 = sphi 0, %s171
      %s173 = sphi 0, %s171
      %s174 = sphi 0, %s173
      %s188 = sphi 0, %s174
      %s192 = sphi 0, %s192
      %s194 = sphi 0, %s192
      %s195 = sphi 0, %s194
      %s209 = sphi 0, %s195
      %s213 = sphi 0, %s213
      %s215 = sphi 0, %s213
      %s216 = sphi 0, %s215
      %s230 = sphi 0, %s216
      %s234 = sphi 0, %s234
      %s236 = sphi 0, %s234
      %s237 = sphi 0, %s236
      %s251 = sphi 0, %s237
      %s259 = sphi 0, %s261
      %s262 = sphi 0, %s259
      %s263 = sphi 0, %s262
      %s279 = sphi 0, %s263
    $region4: #{tpu_custom_call.1} parent=1 // loop_header_branch
      %28 = sbr.rel (%p26) target = $region8
    $region5: #{tpu_custom_call.1} parent=1 // loop_body
      %s30 = ssub.s32 %s25, 1
      %s31 = ssub.s32 %s25, 2
      %s41 = sadd.s32 1, %s34
      %p42 = scmp.ge.s32.totalorder %s41, 1
      %s43 = scalar_select %p42, 0, %s41
      %s44 = sadd.s32 1, %s33
      %s45 = scalar_select %p42, %s44, %s33
      %p46 = scmp.ge.s32.totalorder %s45, 1
      %s47 = scalar_select %p46, 0, %s45
      %s48 = sadd.s32 1, %s32
      %s49 = scalar_select %p46, %s48, %s32
      %p50 = scmp.ge.s32.totalorder %s49, 2
      %s51 = scalar_select %p50, 0, %s49
      %s52 = ssub.s32 %s32, %s51
      %s53 = ssub.s32 %s33, %s47
      %s54 = sor.u32 %s52, %s53
      %p55 = scmp.eq.s32.totalorder %s54, 0
      %s57 = sadd.s32 %s56, 1
      %s58 = scalar_select %p55, %s56, %s57
      %p61 = pneg %p55
      %p62 = scmp.eq.s32.totalorder %s25, 1
      %p63 = por %p61, %p62
      %p64 = scmp.ne.s32.totalorder %s56, %s59
      %p65 = scmp.eq.s32.totalorder %s25, 0
      %p66 = por %p64, %p65
      %p67 = scmp.ne.s32.totalorder %s56, %s59
      %p68 = scmp.eq.s32.totalorder %s30, 1
      %p69 = por %p67, %p68
      %p70 = scmp.ne.s32.totalorder %s59, %s60
      %p71 = scmp.eq.s32.totalorder %s30, 0
      %p72 = por %p70, %p71
      %p73 = scmp.ne.s32.totalorder %s59, %s60
      %p74 = scmp.eq.s32.totalorder %s31, 1
      %p75 = por %p73, %p74
      %p77 = scmp.ne.s32.totalorder %s60, %s76
      %p78 = scmp.eq.s32.totalorder %s31, 0
      %p79 = por %p77, %p78
      %s80 = ssub.s32 %s32, %s51
      %s81 = ssub.s32 %s34, %s43
      %s82 = sor.u32 %s80, %s81
      %p83 = scmp.eq.s32.totalorder %s82, 0
      %s85 = sadd.s32 %s84, 1
      %s86 = scalar_select %p83, %s84, %s85
      %p89 = pneg %p83
      %p90 = scmp.eq.s32.totalorder %s25, 1
      %p91 = por %p89, %p90
      %p92 = scmp.ne.s32.totalorder %s84, %s87
      %p93 = scmp.eq.s32.totalorder %s25, 0
      %p94 = por %p92, %p93
      %p95 = scmp.ne.s32.totalorder %s84, %s87
      %p96 = scmp.eq.s32.totalorder %s30, 1
      %p97 = por %p95, %p96
      %p98 = scmp.ne.s32.totalorder %s87, %s88
      %p99 = scmp.eq.s32.totalorder %s30, 0
      %p100 = por %p98, %p99
      %p101 = scmp.ne.s32.totalorder %s87, %s88
      %p102 = scmp.eq.s32.totalorder %s31, 1
      %p103 = por %p101, %p102
      %p105 = scmp.ne.s32.totalorder %s88, %s104
      %p106 = scmp.eq.s32.totalorder %s31, 0
      %p107 = por %p105, %p106
      %s109 = sadd.s32 %s108, 1
      %p112 = scmp.eq.s32.totalorder %s25, 1
      %p113 = scmp.ne.s32.totalorder %s108, %s110
      %p114 = scmp.eq.s32.totalorder %s25, 0
      %p115 = por %p113, %p114
      %p116 = scmp.ne.s32.totalorder %s108, %s110
      %p117 = scmp.eq.s32.totalorder %s30, 1
      %p118 = por %p116, %p117
      %p119 = scmp.ne.s32.totalorder %s110, %s111
      %p120 = scmp.eq.s32.totalorder %s30, 0
      %p121 = por %p119, %p120
      %p122 = scmp.ne.s32.totalorder %s110, %s111
      %p123 = scmp.eq.s32.totalorder %s31, 1
      %p124 = por %p122, %p123
      %p126 = scmp.ne.s32.totalorder %s111, %s125
      %p127 = scmp.eq.s32.totalorder %s31, 0
      %p128 = por %p126, %p127
      %s130 = sadd.s32 %s129, 1
      %p133 = scmp.eq.s32.totalorder %s25, 1
      %p134 = scmp.ne.s32.totalorder %s129, %s131
      %p135 = scmp.eq.s32.totalorder %s25, 0
      %p136 = por %p134, %p135
      %p137 = scmp.ne.s32.totalorder %s129, %s131
      %p138 = scmp.eq.s32.totalorder %s30, 1
      %p139 = por %p137, %p138
      %p140 = scmp.ne.s32.totalorder %s131, %s132
      %p141 = scmp.eq.s32.totalorder %s30, 0
      %p142 = por %p140, %p141
      %p143 = scmp.ne.s32.totalorder %s131, %s132
      %p144 = scmp.eq.s32.totalorder %s31, 1
      %p145 = por %p143, %p144
      %p147 = scmp.ne.s32.totalorder %s132, %s146
      %p148 = scmp.eq.s32.totalorder %s31, 0
      %p149 = por %p147, %p148
      %s151 = sadd.s32 %s150, 1
      %p154 = scmp.eq.s32.totalorder %s25, 1
      %p155 = scmp.ne.s32.totalorder %s150, %s152
      %p156 = scmp.eq.s32.totalorder %s25, 0
      %p157 = por %p155, %p156
      %p158 = scmp.ne.s32.totalorder %s150, %s152
      %p159 = scmp.eq.s32.totalorder %s30, 1
      %p160 = por %p158, %p159
      %p161 = scmp.ne.s32.totalorder %s152, %s153
      %p162 = scmp.eq.s32.totalorder %s30, 0
      %p163 = por %p161, %p162
      %p164 = scmp.ne.s32.totalorder %s152, %s153
      %p165 = scmp.eq.s32.totalorder %s31, 1
      %p166 = por %p164, %p165
      %p168 = scmp.ne.s32.totalorder %s153, %s167
      %p169 = scmp.eq.s32.totalorder %s31, 0
      %p170 = por %p168, %p169
      %s172 = sadd.s32 %s171, 1
      %p175 = scmp.eq.s32.totalorder %s25, 1
      %p176 = scmp.ne.s32.totalorder %s171, %s173
      %p177 = scmp.eq.s32.totalorder %s25, 0
      %p178 = por %p176, %p177
      %p179 = scmp.ne.s32.totalorder %s171, %s173
      %p180 = scmp.eq.s32.totalorder %s30, 1
      %p181 = por %p179, %p180
      %p182 = scmp.ne.s32.totalorder %s173, %s174
      %p183 = scmp.eq.s32.totalorder %s30, 0
      %p184 = por %p182, %p183
      %p185 = scmp.ne.s32.totalorder %s173, %s174
      %p186 = scmp.eq.s32.totalorder %s31, 1
      %p187 = por %p185, %p186
      %p189 = scmp.ne.s32.totalorder %s174, %s188
      %p190 = scmp.eq.s32.totalorder %s31, 0
      %p191 = por %p189, %p190
      %s193 = sadd.s32 %s192, 1
      %p196 = scmp.eq.s32.totalorder %s25, 1
      %p197 = scmp.ne.s32.totalorder %s192, %s194
      %p198 = scmp.eq.s32.totalorder %s25, 0
      %p199 = por %p197, %p198
      %p200 = scmp.ne.s32.totalorder %s192, %s194
      %p201 = scmp.eq.s32.totalorder %s30, 1
      %p202 = por %p200, %p201
      %p203 = scmp.ne.s32.totalorder %s194, %s195
      %p204 = scmp.eq.s32.totalorder %s30, 0
      %p205 = por %p203, %p204
      %p206 = scmp.ne.s32.totalorder %s194, %s195
      %p207 = scmp.eq.s32.totalorder %s31, 1
      %p208 = por %p206, %p207
      %p210 = scmp.ne.s32.totalorder %s195, %s209
      %p211 = scmp.eq.s32.totalorder %s31, 0
      %p212 = por %p210, %p211
      %s214 = sadd.s32 %s213, 1
      %p217 = scmp.eq.s32.totalorder %s25, 1
      %p218 = scmp.ne.s32.totalorder %s213, %s215
      %p219 = scmp.eq.s32.totalorder %s25, 0
      %p220 = por %p218, %p219
      %p221 = scmp.ne.s32.totalorder %s213, %s215
      %p222 = scmp.eq.s32.totalorder %s30, 1
      %p223 = por %p221, %p222
      %p224 = scmp.ne.s32.totalorder %s215, %s216
      %p225 = scmp.eq.s32.totalorder %s30, 0
      %p226 = por %p224, %p225
      %p227 = scmp.ne.s32.totalorder %s215, %s216
      %p228 = scmp.eq.s32.totalorder %s31, 1
      %p229 = por %p227, %p228
      %p231 = scmp.ne.s32.totalorder %s216, %s230
      %p232 = scmp.eq.s32.totalorder %s31, 0
      %p233 = por %p231, %p232
      %s235 = sadd.s32 %s234, 1
      %p238 = scmp.eq.s32.totalorder %s25, 1
      %p239 = scmp.ne.s32.totalorder %s234, %s236
      %p240 = scmp.eq.s32.totalorder %s25, 0
      %p241 = por %p239, %p240
      %p242 = scmp.ne.s32.totalorder %s234, %s236
      %p243 = scmp.eq.s32.totalorder %s30, 1
      %p244 = por %p242, %p243
      %p245 = scmp.ne.s32.totalorder %s236, %s237
      %p246 = scmp.eq.s32.totalorder %s30, 0
      %p247 = por %p245, %p246
      %p248 = scmp.ne.s32.totalorder %s236, %s237
      %p249 = scmp.eq.s32.totalorder %s31, 1
      %p250 = por %p248, %p249
      %p252 = scmp.ne.s32.totalorder %s237, %s251
      %p253 = scmp.eq.s32.totalorder %s31, 0
      %p254 = por %p252, %p253
      %s255 = ssub.s32 %s32, %s51
      %s256 = ssub.s32 %s33, %s47
      %s257 = sor.u32 %s255, %s256
      %p258 = scmp.eq.s32.totalorder %s257, 0
      %s260 = sadd.s32 %s259, 1
      %s261 = scalar_select %p258, %s259, %s260
      %p264 = pneg %p258
      %p265 = scmp.eq.s32.totalorder %s25, 1
      %p266 = por %p264, %p265
      %p267 = scmp.ne.s32.totalorder %s259, %s262
      %p268 = scmp.eq.s32.totalorder %s25, 0
      %p269 = por %p267, %p268
      %p270 = scmp.ne.s32.totalorder %s259, %s262
      %p271 = scmp.eq.s32.totalorder %s30, 1
      %p272 = por %p270, %p271
      %p273 = scmp.ne.s32.totalorder %s262, %s263
      %p274 = scmp.eq.s32.totalorder %s30, 0
      %p275 = por %p273, %p274
      %p276 = scmp.ne.s32.totalorder %s262, %s263
      %p277 = scmp.eq.s32.totalorder %s31, 1
      %p278 = por %p276, %p277
      %p280 = scmp.ne.s32.totalorder %s263, %s279
      %p281 = scmp.eq.s32.totalorder %s31, 0
      %p282 = por %p280, %p281
      %p283 = scmp.le.s32.totalorder 1, %s25
      %p284 = scmp.lt.s32.totalorder %s25, 3
      %p285 = pnand %p283, %p284
      %p286 = pneg %p285
      // Predicated region
      $region9: #{tpu_custom_call.1} parent=5 // pred_check
        _
      $region10: #{tpu_custom_call.1} parent=5 // pred_check_branch
        %288 = sbr.rel (%p285) target = $region12
      $region11: #{tpu_custom_call.1} parent=5 // pred_region
        %s289 = ssub.s32 %s25, 1
        // Predicated region
        $region13: #{tpu_custom_call.1} parent=11 // pred_check
          %p290 = pneg %p121
        $region14: #{tpu_custom_call.1} parent=11 // pred_check_branch
          %292 = sbr.rel (%p290) target = $region16
        $region15: #{tpu_custom_call.1} parent=11 // pred_region
          _
        $region16: #{tpu_custom_call.1} parent=11 // pred_fallthru
          _
        // Predicated region
        $region17: #{tpu_custom_call.1} parent=11 // pred_check
          %p293 = pneg %p142
        $region18: #{tpu_custom_call.1} parent=11 // pred_check_branch
          %295 = sbr.rel (%p293) target = $region20
        $region19: #{tpu_custom_call.1} parent=11 // pred_region
          %s297 = ssub.s32 512, 512
          %298 = vsyncadd [#allocation11], %s297
          %s299 = sshll.u32 [#allocation12], 4
          %s300 = int_to_ptr.vmem [resolvable:$true] %s299
          %305 = dma.hbm_to_vmem [thread:$0]  %s3, 512, %s300, [#allocation11], 128, 128, 8
        $region20: #{tpu_custom_call.1} parent=11 // pred_fallthru
          _
        // Predicated region
        $region21: #{tpu_custom_call.1} parent=11 // pred_check
          %p306 = pneg %p163
        $region22: #{tpu_custom_call.1} parent=11 // pred_check_branch
          %308 = sbr.rel (%p306) target = $region24
        $region23: #{tpu_custom_call.1} parent=11 // pred_region
          _
        $region24: #{tpu_custom_call.1} parent=11 // pred_fallthru
          _
        // Predicated region
        $region25: #{tpu_custom_call.1} parent=11 // pred_check
          %p309 = pneg %p184
        $region26: #{tpu_custom_call.1} parent=11 // pred_check_branch
          %311 = sbr.rel (%p309) target = $region28
        $region27: #{tpu_custom_call.1} parent=11 // pred_region
          %s313 = ssub.s32 512, 512
          %314 = vsyncadd [#allocation14], %s313
          %s315 = sshll.u32 [#allocation13], 4
          %s316 = int_to_ptr.vmem [resolvable:$true] %s315
          %321 = dma.hbm_to_vmem [thread:$0]  %s5, 512, %s316, [#allocation14], 128, 128, 8
        $region28: #{tpu_custom_call.1} parent=11 // pred_fallthru
          _
        // Predicated region
        $region29: #{tpu_custom_call.1} parent=11 // pred_check
          %p322 = pneg %p205
        $region30: #{tpu_custom_call.1} parent=11 // pred_check_branch
          %324 = sbr.rel (%p322) target = $region32
        $region31: #{tpu_custom_call.1} parent=11 // pred_region
          _
        $region32: #{tpu_custom_call.1} parent=11 // pred_fallthru
          _
        // Predicated region
        $region33: #{tpu_custom_call.1} parent=11 // pred_check
          %p325 = pneg %p226
        $region34: #{tpu_custom_call.1} parent=11 // pred_check_branch
          %327 = sbr.rel (%p325) target = $region36
        $region35: #{tpu_custom_call.1} parent=11 // pred_region
          %s329 = ssub.s32 512, 512
          %330 = vsyncadd [#allocation14], %s329
          %s331 = sshll.u32 [#allocation15], 4
          %s332 = int_to_ptr.vmem [resolvable:$true] %s331
          %337 = dma.hbm_to_vmem [thread:$0]  %s7, 512, %s332, [#allocation14], 128, 128, 8
        $region36: #{tpu_custom_call.1} parent=11 // pred_fallthru
          _
        // Predicated region
        $region37: #{tpu_custom_call.1} parent=11 // pred_check
          %p338 = pneg %p247
        $region38: #{tpu_custom_call.1} parent=11 // pred_check_branch
          %340 = sbr.rel (%p338) target = $region40
        $region39: #{tpu_custom_call.1} parent=11 // pred_region
          _
        $region40: #{tpu_custom_call.1} parent=11 // pred_fallthru
          _
      $region12: #{tpu_custom_call.1} parent=5 // pred_fallthru
        _
      %p341 = scmp.lt.s32.totalorder %s25, 2
      // Predicated region
      $region41: #{tpu_custom_call.1} parent=5 // pred_check
        %p342 = pneg %p341
      $region42: #{tpu_custom_call.1} parent=5 // pred_check_branch
        %344 = sbr.rel (%p342) target = $region44
      $region43: #{tpu_custom_call.1} parent=5 // pred_region
        // Predicated region
        $region45: #{tpu_custom_call.1} parent=43 // pred_check
          %p345 = pneg %p66
        $region46: #{tpu_custom_call.1} parent=43 // pred_check_branch
          %347 = sbr.rel (%p345) target = $region48
        $region47: #{tpu_custom_call.1} parent=43 // pred_region
          %s348 = sand.u32 %s56, 1
          %s349 = scalar_lea.sflag [#allocation8], %s348
          %s350 = sand.u32 %s56, 1
          %s351 = smul.addr %s350, 8
          %s352 = scalar_lea.vmem [#allocation7], %s351
          %s354 = ssub.s32 128, 128
          %355 = vsyncadd %s349, %s354
          %s356 = sadd.s32 %s33, %s32
          %s357 = smul.addr %s356, 128
          %s358 = scalar_lea.hbm %s0, %s357
          %s360 = sshll.u32 %s352, 4
          %s361 = int_to_ptr.vmem [resolvable:$true] %s360
          %363 = dma.hbm_to_vmem [thread:$0]  %s358, 128, %s361, %s349
        $region48: #{tpu_custom_call.1} parent=43 // pred_fallthru
          _
        // Predicated region
        $region49: #{tpu_custom_call.1} parent=43 // pred_check
          %p364 = pneg %p94
        $region50: #{tpu_custom_call.1} parent=43 // pred_check_branch
          %366 = sbr.rel (%p364) target = $region52
        $region51: #{tpu_custom_call.1} parent=43 // pred_region
          %s367 = sand.u32 %s25, 1
          %s368 = scalar_lea.sflag [#allocation11], %s367
          %s369 = sand.u32 %s84, 1
          %s370 = smul.addr %s369, 8
          %s371 = scalar_lea.vmem [#allocation10], %s370
          %s373 = ssub.s32 128, 128
          %374 = vsyncadd %s368, %s373
          %s375 = sadd.s32 %s34, %s32
          %s376 = smul.addr %s375, 128
          %s377 = scalar_lea.hbm %s1, %s376
          %s379 = sshll.u32 %s371, 4
          %s380 = int_to_ptr.vmem [resolvable:$true] %s379
          %382 = dma.hbm_to_vmem [thread:$0]  %s377, 128, %s380, %s368
        $region52: #{tpu_custom_call.1} parent=43 // pred_fallthru
          _
      $region44: #{tpu_custom_call.1} parent=5 // pred_fallthru
        _
      %p383 = scmp.le.s32.totalorder 1, %s25
      %p384 = scmp.lt.s32.totalorder %s25, 3
      %p385 = pnand %p383, %p384
      %p386 = pneg %p385
      // Predicated region
      $region53: #{tpu_custom_call.1} parent=5 // pred_check
        _
      $region54: #{tpu_custom_call.1} parent=5 // pred_check_branch
        %388 = sbr.rel (%p385) target = $region56
      $region55: #{tpu_custom_call.1} parent=5 // pred_region
        %s389 = ssub.s32 %s25, 1
        %s390 = sand.u32 %s59, 1
        %s391 = scalar_lea.sflag [#allocation8], %s390
        %s392 = sand.u32 %s59, 1
        %s393 = smul.addr %s392, 8
        %s394 = scalar_lea.vmem [#allocation7], %s393
        // Predicated region
        $region57: #{tpu_custom_call.1} parent=55 // pred_check
          %p395 = pneg %p72
        $region58: #{tpu_custom_call.1} parent=55 // pred_check_branch
          %397 = sbr.rel (%p395) target = $region60
        $region59: #{tpu_custom_call.1} parent=55 // pred_region
          %398 = dma.done %s391, 128
        $region60: #{tpu_custom_call.1} parent=55 // pred_fallthru
          _
        %s399 = sand.u32 %s30, 1
        %s400 = scalar_lea.sflag [#allocation11], %s399
        %s401 = sand.u32 %s87, 1
        %s402 = smul.addr %s401, 8
        %s403 = scalar_lea.vmem [#allocation10], %s402
        // Predicated region
        $region61: #{tpu_custom_call.1} parent=55 // pred_check
          %p404 = pneg %p100
        $region62: #{tpu_custom_call.1} parent=55 // pred_check_branch
          %406 = sbr.rel (%p404) target = $region64
        $region63: #{tpu_custom_call.1} parent=55 // pred_region
          %407 = dma.done %s400, 128
        $region64: #{tpu_custom_call.1} parent=55 // pred_fallthru
          _
        // Predicated region
        $region65: #{tpu_custom_call.1} parent=55 // pred_check
          %p408 = pneg %p142
        $region66: #{tpu_custom_call.1} parent=55 // pred_check_branch
          %410 = sbr.rel (%p408) target = $region68
        $region67: #{tpu_custom_call.1} parent=55 // pred_region
          %411 = dma.done [#allocation11], 512
        $region68: #{tpu_custom_call.1} parent=55 // pred_fallthru
          _
        // Predicated region
        $region69: #{tpu_custom_call.1} parent=55 // pred_check
          %p412 = pneg %p184
        $region70: #{tpu_custom_call.1} parent=55 // pred_check_branch
          %414 = sbr.rel (%p412) target = $region72
        $region71: #{tpu_custom_call.1} parent=55 // pred_region
          %415 = dma.done [#allocation14], 512
        $region72: #{tpu_custom_call.1} parent=55 // pred_fallthru
          _
        // Predicated region
        $region73: #{tpu_custom_call.1} parent=55 // pred_check
          %p416 = pneg %p226
        $region74: #{tpu_custom_call.1} parent=55 // pred_check_branch
          %418 = sbr.rel (%p416) target = $region76
        $region75: #{tpu_custom_call.1} parent=55 // pred_region
          %419 = dma.done [#allocation14], 512
        $region76: #{tpu_custom_call.1} parent=55 // pred_fallthru
          _
        %s420 = sand.u32 %s59, 1
        %s421 = scalar_lea.sflag [#allocation8], %s420
        %s422 = sand.u32 %s59, 1
        %s423 = smul.addr %s422, 8
        %s424 = scalar_lea.vmem [#allocation7], %s423
        %p425 = pneg %p72
        %p426 = pneg %p69
        %s427 = sand.u32 %s30, 1
        %s428 = scalar_lea.sflag [#allocation11], %s427
        %s429 = sand.u32 %s87, 1
        %s430 = smul.addr %s429, 8
        %s431 = scalar_lea.vmem [#allocation10], %s430
        %p432 = pneg %p100
        %p433 = pneg %p97
        %p434 = pneg %p121
        %p435 = pneg %p118
        %p436 = pneg %p142
        %p437 = pneg %p139
        %p438 = pneg %p163
        %p439 = pneg %p160
        %p440 = pneg %p184
        %p441 = pneg %p181
        %p442 = pneg %p205
        %p443 = pneg %p202
        %p444 = pneg %p226
        %p445 = pneg %p223
        %p446 = pneg %p247
        %p447 = pneg %p244
        %p448 = pneg %p275
        %p449 = pneg %p272
        %s450 = sand.u32 %s262, 1
        %s451 = scalar_lea.sflag [#allocation9], %s450
        %s452 = sand.u32 %s262, 1
        %s453 = smul.addr %s452, 8
        %s454 = scalar_lea.vmem [#allocation16], %s453
        %p455 = scmp.eq.s32.totalorder %s37, 0
        // Predicated region
        $region77: #{tpu_custom_call.1} parent=55 // pred_check
          %p456 = pneg %p455
        $region78: #{tpu_custom_call.1} parent=55 // pred_check_branch
          %458 = sbr.rel (%p456) target = $region80
        $region79: #{tpu_custom_call.1} parent=55 // pred_region
          %v459 = vld [vmem:[%s394] sm:$0xff]
          %v460 = vmul.f32 %v459, %v459
          %vm461 = vcmask 261120
          %v462 = vsel %vm461, %v460, 0.0
          %463 = vadd.xlane.f32.xlu0 %v462
          %v464 = vpop.xlane.xlu0 %463
          %v465 = vrcp.pop 32.0
          %v466 = vmul.f32 %v464, %v465
          %v467 = vrsqrt.pop %v466
          %v468 = vmul.f32 %v466, %v467
          %vm469 = vcmp.eq.f32.partialorder %v466, inf
          %v470 = vsel %vm469, %v466, %v468
          %vm471 = vcmp.eq.f32.partialorder %v466, 0.0
          %v472 = vand.u32 %v466, 2147483648
          %v473 = vsel %vm471, %v472, %v470
          %v474 = vadd.f32 %v473, 1e-06
          %v475 = vrcp.pop %v474
          %v476 = vmul.f32 1.0, %v475
          %v477 = vld [vmem:[%s2] sm:$0x1]
          %v479 = vlaneseq
          %v480 = vshrl.u32 %v479, 7
          %v481 = vsub.s32 0, %v480
          %v482 = vrot.slane %v477, %v481
          %v484 = vmul.f32 %v482, %v459
          %v485 = vmul.f32 %v484, %v476
          %v486 = vld [vmem:[#allocation12] sm:$0xff]
          %v487 = vld [vmem:[#allocation12 + $0x8] sm:$0xff]
          %v488 = vld [vmem:[#allocation12 + $0x10] sm:$0xff]
          %v489 = vld [vmem:[#allocation12 + $0x18] sm:$0xff]
          %v490 = vld [vmem:[%s4] sm:$0x1]
          %v492 = vlaneseq
          %v493 = vshrl.u32 %v492, 7
          %v494 = vsub.s32 0, %v493
          %v495 = vrot.slane %v490, %v494
          %v498 = vsel %vm461, %v485, 0
          %500 = vmatprep.subr.mxu0 0.0
          %501 = vmatpush1.msra.mxu0 %v486
          %502 = vmatprep.subr.mxu0 0.0
          %503 = vmatpush1.msra.mxu0 %v487
          %504 = vmatprep.subr.mxu0 0.0
          %505 = vmatpush1.msra.mxu0 %v488
          %506 = vmatprep.subr.mxu0 0.0
          %507 = vmatpush1.msra.mxu0 %v489
          %508 = vmatprep.subr.mxu0 0.0
          %509 = vmatpush1.msra.mxu0 0.0
          %510 = vmatprep.subr.mxu0 0.0
          %511 = vmatpush1.msra.mxu0 0.0
          %512 = vmatprep.subr.mxu0 0.0
          %513 = vmatpush1.msra.mxu0 0.0
          %514 = vmatprep.subr.mxu0 0.0
          %515 = vmatpush1.msra.mxu0 0.0
          %516 = vmatprep.subr.mxu0 0.0
          %517 = vmatpush1.msra.mxu0 0.0
          %518 = vmatprep.subr.mxu0 0.0
          %519 = vmatpush1.msra.mxu0 0.0
          %520 = vmatprep.subr.mxu0 0.0
          %521 = vmatpush1.msra.mxu0 0.0
          %522 = vmatprep.subr.mxu0 0.0
          %523 = vmatpush1.msra.mxu0 0.0
          %524 = vmatprep.subr.mxu0 0.0
          %525 = vmatpush1.msra.mxu0 0.0
          %526 = vmatprep.subr.mxu0 0.0
          %527 = vmatpush1.msra.mxu0 0.0
          %528 = vmatprep.subr.mxu0 0.0
          %529 = vmatpush1.msra.mxu0 0.0
          %530 = vmatprep.subr.mxu0 0.0
          %531 = vmatpush1.msra.mxu0 0.0
          %532 = vmatprep.subr.mxu0 0.0
          %533 = vmatpush1.msra.mxu0 0.0
          %534 = vmatprep.subr.mxu0 0.0
          %535 = vmatpush1.msra.mxu0 0.0
          %536 = vmatprep.subr.mxu0 0.0
          %537 = vmatpush1.msra.mxu0 0.0
          %538 = vmatprep.subr.mxu0 0.0
          %539 = vmatpush1.msra.mxu0 0.0
          %540 = vmatprep.subr.mxu0 0.0
          %541 = vmatpush1.msra.mxu0 0.0
          %542 = vmatprep.subr.mxu0 0.0
          %543 = vmatpush1.msra.mxu0 0.0
          %544 = vmatprep.subr.mxu0 0.0
          %545 = vmatpush1.msra.mxu0 0.0
          %546 = vmatprep.subr.mxu0 0.0
          %547 = vmatpush1.msra.mxu0 0.0
          %548 = vmatprep.subr.mxu0 0.0
          %549 = vmatpush1.msra.mxu0 0.0
          %550 = vmatprep.subr.mxu0 0.0
          %551 = vmatpush1.msra.mxu0 0.0
          %552 = vmatprep.subr.mxu0 0.0
          %553 = vmatpush1.msra.mxu0 0.0
          %554 = vmatprep.subr.mxu0 0.0
          %555 = vmatpush1.msra.mxu0 0.0
          %556 = vmatprep.subr.mxu0 0.0
          %557 = vmatpush1.msra.mxu0 0.0
          %558 = vmatprep.subr.mxu0 0.0
          %559 = vmatpush1.msra.mxu0 0.0
          %560 = vmatprep.subr.mxu0 0.0
          %561 = vmatpush1.msra.mxu0 0.0
          %562 = vmatprep.subr.mxu0 0.0
          %563 = vmatpush1.msra.mxu0 0.0
          %564 = vmatprep.mubr.f32.mxu0 0.0
          %565 = vmatmul.mubr.f32.gmra.mrb[0].mxu0 %v498
          %v566 = vpop.f32.mrb[0].mxu0
          %v567 = vadd.f32 %v495, %v566
          %v568 = vpop.f32.mrb[0].mxu0
          %569 = vdwg.mxu0
          %v570 = vmul.f32 %v567, 0.35355338
          %571 = vst.msk [vmem:[#allocation2] sm:$0xff] %vm461, %v570
          %vm572 = vcmask 7168
          %573 = vst.msk [vmem:[#allocation4] sm:$0xff] %vm572, -1e+30
          %574 = vst.msk [vmem:[#allocation4 + $0x8] sm:$0xff] %vm572, -1e+30
          %575 = vst.msk [vmem:[#allocation4 + $0x10] sm:$0xff] %vm572, -1e+30
          %576 = vst.msk [vmem:[#allocation4 + $0x18] sm:$0xff] %vm572, -1e+30
          %577 = vst.msk [vmem:[#allocation5] sm:$0xff] %vm572, 0.0
          %578 = vst.msk [vmem:[#allocation5 + $0x8] sm:$0xff] %vm572, 0.0
          %579 = vst.msk [vmem:[#allocation5 + $0x10] sm:$0xff] %vm572, 0.0
          %580 = vst.msk [vmem:[#allocation5 + $0x18] sm:$0xff] %vm572, 0.0
          %581 = vst.msk [vmem:[#allocation6] sm:$0xff] %vm461, 0.0
        $region80: #{tpu_custom_call.1} parent=55 // pred_fallthru
          _
        %s582 = smul.u32 %s37, 8
        %s583 = smul.u32 %s36, 8
        %s584 = sadd.s32 %s583, 7
        %p585 = scmp.le.s32.totalorder %s582, %s584
        // Predicated region
        $region81: #{tpu_custom_call.1} parent=55 // pred_check
          %p586 = pneg %p585
        $region82: #{tpu_custom_call.1} parent=55 // pred_check_branch
          %588 = sbr.rel (%p586) target = $region84
        $region83: #{tpu_custom_call.1} parent=55 // pred_region
          %v589 = vld [vmem:[%s403] sm:$0xff]
          %v590 = vmul.f32 %v589, %v589
          %vm591 = vcmask 261120
          %v592 = vsel %vm591, %v590, 0.0
          %593 = vadd.xlane.f32.xlu0 %v592
          %v594 = vpop.xlane.xlu0 %593
          %v595 = vrcp.pop 32.0
          %v596 = vmul.f32 %v594, %v595
          %v597 = vrsqrt.pop %v596
          %v598 = vmul.f32 %v596, %v597
          %vm599 = vcmp.eq.f32.partialorder %v596, inf
          %v600 = vsel %vm599, %v596, %v598
          %vm601 = vcmp.eq.f32.partialorder %v596, 0.0
          %v602 = vand.u32 %v596, 2147483648
          %v603 = vsel %vm601, %v602, %v600
          %v604 = vadd.f32 %v603, 1e-06
          %v605 = vrcp.pop %v604
          %v606 = vmul.f32 1.0, %v605
          %v607 = vld [vmem:[%s2] sm:$0x1]
          %v609 = vlaneseq
          %v610 = vshrl.u32 %v609, 7
          %v611 = vsub.s32 0, %v610
          %v612 = vrot.slane %v607, %v611
          %v614 = vmul.f32 %v612, %v589
          %v615 = vmul.f32 %v614, %v606
          %v616 = vld [vmem:[#allocation13] sm:$0xff]
          %v617 = vld [vmem:[#allocation13 + $0x8] sm:$0xff]
          %v618 = vld [vmem:[#allocation13 + $0x10] sm:$0xff]
          %v619 = vld [vmem:[#allocation13 + $0x18] sm:$0xff]
          %v620 = vld [vmem:[%s6] sm:$0x1]
          %v622 = vlaneseq
          %v623 = vshrl.u32 %v622, 7
          %v624 = vsub.s32 0, %v623
          %v625 = vrot.slane %v620, %v624
          %v628 = vsel %vm591, %v615, 0
          %630 = vmatprep.subr.mxu0 0.0
          %631 = vmatpush1.msra.mxu0 %v616
          %632 = vmatprep.subr.mxu0 0.0
          %633 = vmatpush1.msra.mxu0 %v617
          %634 = vmatprep.subr.mxu0 0.0
          %635 = vmatpush1.msra.mxu0 %v618
          %636 = vmatprep.subr.mxu0 0.0
          %637 = vmatpush1.msra.mxu0 %v619
          %638 = vmatprep.subr.mxu0 0.0
          %639 = vmatpush1.msra.mxu0 0.0
          %640 = vmatprep.subr.mxu0 0.0
          %641 = vmatpush1.msra.mxu0 0.0
          %642 = vmatprep.subr.mxu0 0.0
          %643 = vmatpush1.msra.mxu0 0.0
          %644 = vmatprep.subr.mxu0 0.0
          %645 = vmatpush1.msra.mxu0 0.0
          %646 = vmatprep.subr.mxu0 0.0
          %647 = vmatpush1.msra.mxu0 0.0
          %648 = vmatprep.subr.mxu0 0.0
          %649 = vmatpush1.msra.mxu0 0.0
          %650 = vmatprep.subr.mxu0 0.0
          %651 = vmatpush1.msra.mxu0 0.0
          %652 = vmatprep.subr.mxu0 0.0
          %653 = vmatpush1.msra.mxu0 0.0
          %654 = vmatprep.subr.mxu0 0.0
          %655 = vmatpush1.msra.mxu0 0.0
          %656 = vmatprep.subr.mxu0 0.0
          %657 = vmatpush1.msra.mxu0 0.0
          %658 = vmatprep.subr.mxu0 0.0
          %659 = vmatpush1.msra.mxu0 0.0
          %660 = vmatprep.subr.mxu0 0.0
          %661 = vmatpush1.msra.mxu0 0.0
          %662 = vmatprep.subr.mxu0 0.0
          %663 = vmatpush1.msra.mxu0 0.0
          %664 = vmatprep.subr.mxu0 0.0
          %665 = vmatpush1.msra.mxu0 0.0
          %666 = vmatprep.subr.mxu0 0.0
          %667 = vmatpush1.msra.mxu0 0.0
          %668 = vmatprep.subr.mxu0 0.0
          %669 = vmatpush1.msra.mxu0 0.0
          %670 = vmatprep.subr.mxu0 0.0
          %671 = vmatpush1.msra.mxu0 0.0
          %672 = vmatprep.subr.mxu0 0.0
          %673 = vmatpush1.msra.mxu0 0.0
          %674 = vmatprep.subr.mxu0 0.0
          %675 = vmatpush1.msra.mxu0 0.0
          %676 = vmatprep.subr.mxu0 0.0
          %677 = vmatpush1.msra.mxu0 0.0
          %678 = vmatprep.subr.mxu0 0.0
          %679 = vmatpush1.msra.mxu0 0.0
          %680 = vmatprep.subr.mxu0 0.0
          %681 = vmatpush1.msra.mxu0 0.0
          %682 = vmatprep.subr.mxu0 0.0
          %683 = vmatpush1.msra.mxu0 0.0
          %684 = vmatprep.subr.mxu0 0.0
          %685 = vmatpush1.msra.mxu0 0.0
          %686 = vmatprep.subr.mxu0 0.0
          %687 = vmatpush1.msra.mxu0 0.0
          %688 = vmatprep.subr.mxu0 0.0
          %689 = vmatpush1.msra.mxu0 0.0
          %690 = vmatprep.subr.mxu0 0.0
          %691 = vmatpush1.msra.mxu0 0.0
          %692 = vmatprep.subr.mxu0 0.0
          %693 = vmatpush1.msra.mxu0 0.0
          %694 = vmatprep.mubr.f32.mxu0 0.0
          %695 = vmatmul.mubr.f32.gmra.mrb[0].mxu0 %v628
          %v696 = vpop.f32.mrb[0].mxu0
          %v697 = vadd.f32 %v625, %v696
          %v698 = vpop.f32.mrb[0].mxu0
          %699 = vdwg.mxu0
          %vm700 = vcmask 523264
          %701 = vst.msk [vmem:[#allocation3] sm:$0xff] %vm700, %v697
          %v702 = vlaneseq
          %v703 = vshrl.u32 %v702, 7
          %v704 = vstv %s583
          %v705 = vadd.s32 %v704, %v703
          %v706 = vlaneseq
          %v707 = vand.u32 %v706, 127
          %v708 = vstv %s582
          %v709 = vadd.s32 %v708, %v707
          %vm710 = vcmp.ge.s32.totalorder %v705, %v709
          %v711 = vld [vmem:[#allocation2] sm:$0xff]
          %v712 = vld [vmem:[#allocation3] sm:$0xff]
          %vm713 = vcmask 64512
          %v715 = vsel %vm713, %v711, 0
          %v718 = vsel %vm713, %v712, 0
          %720 = vmatprep.subr.mxu0 0.0
          %721 = vmatpush1.xpose.msra.mxu0 %v718
          %722 = vmatprep.subr.mxu0 0.0
          %723 = vmatpush1.xpose.msra.mxu0 0.0
          %724 = vmatprep.subr.mxu0 0.0
          %725 = vmatpush1.xpose.msra.mxu0 0.0
          %726 = vmatprep.subr.mxu0 0.0
          %727 = vmatpush1.xpose.msra.mxu0 0.0
          %728 = vmatprep.subr.mxu0 0.0
          %729 = vmatpush1.xpose.msra.mxu0 0.0
          %730 = vmatprep.subr.mxu0 0.0
          %731 = vmatpush1.xpose.msra.mxu0 0.0
          %732 = vmatprep.subr.mxu0 0.0
          %733 = vmatpush1.xpose.msra.mxu0 0.0
          %734 = vmatprep.subr.mxu0 0.0
          %735 = vmatpush1.xpose.msra.mxu0 0.0
          %736 = vmatprep.subr.mxu0 0.0
          %737 = vmatpush1.xpose.msra.mxu0 0.0
          %738 = vmatprep.subr.mxu0 0.0
          %739 = vmatpush1.xpose.msra.mxu0 0.0
          %740 = vmatprep.subr.mxu0 0.0
          %741 = vmatpush1.xpose.msra.mxu0 0.0
          %742 = vmatprep.subr.mxu0 0.0
          %743 = vmatpush1.xpose.msra.mxu0 0.0
          %744 = vmatprep.subr.mxu0 0.0
          %745 = vmatpush1.xpose.msra.mxu0 0.0
          %746 = vmatprep.subr.mxu0 0.0
          %747 = vmatpush1.xpose.msra.mxu0 0.0
          %748 = vmatprep.subr.mxu0 0.0
          %749 = vmatpush1.xpose.msra.mxu0 0.0
          %750 = vmatprep.subr.mxu0 0.0
          %751 = vmatpush1.xpose.msra.mxu0 0.0
          %752 = vmatprep.subr.mxu0 0.0
          %753 = vmatpush1.xpose.msra.mxu0 0.0
          %754 = vmatprep.subr.mxu0 0.0
          %755 = vmatpush1.xpose.msra.mxu0 0.0
          %756 = vmatprep.subr.mxu0 0.0
          %757 = vmatpush1.xpose.msra.mxu0 0.0
          %758 = vmatprep.subr.mxu0 0.0
          %759 = vmatpush1.xpose.msra.mxu0 0.0
          %760 = vmatprep.subr.mxu0 0.0
          %761 = vmatpush1.xpose.msra.mxu0 0.0
          %762 = vmatprep.subr.mxu0 0.0
          %763 = vmatpush1.xpose.msra.mxu0 0.0
          %764 = vmatprep.subr.mxu0 0.0
          %765 = vmatpush1.xpose.msra.mxu0 0.0
          %766 = vmatprep.subr.mxu0 0.0
          %767 = vmatpush1.xpose.msra.mxu0 0.0
          %768 = vmatprep.subr.mxu0 0.0
          %769 = vmatpush1.xpose.msra.mxu0 0.0
          %770 = vmatprep.subr.mxu0 0.0
          %771 = vmatpush1.xpose.msra.mxu0 0.0
          %772 = vmatprep.subr.mxu0 0.0
          %773 = vmatpush1.xpose.msra.mxu0 0.0
          %774 = vmatprep.subr.mxu0 0.0
          %775 = vmatpush1.xpose.msra.mxu0 0.0
          %776 = vmatprep.subr.mxu0 0.0
          %777 = vmatpush1.xpose.msra.mxu0 0.0
          %778 = vmatprep.subr.mxu0 0.0
          %779 = vmatpush1.xpose.msra.mxu0 0.0
          %780 = vmatprep.subr.mxu0 0.0
          %781 = vmatpush1.xpose.msra.mxu0 0.0
          %782 = vmatprep.subr.mxu0 0.0
          %783 = vmatpush1.xpose.msra.mxu0 0.0
          %784 = vmatprep.mubr.f32.mxu0 0.0
          %785 = vmatmul.mubr.f32.gmra.mrb[0].mxu0 %v715
          %v786 = vpop.f32.mrb[0].mxu0
          %v787 = vadd.f32 0.0, %v786
          %v788 = vpop.f32.mrb[0].mxu0
          %789 = vdwg.mxu0
          %v790 = vsel %vm710, %v787, -1e+30
          %v791 = vld [vmem:[#allocation4] sm:$0xff]
          %v792 = vsel %vm713, %v790, -inf
          %793 = vmax.xlane.f32.xlu0 %v792
          %v794 = vpop.xlane.xlu0 %793
          %v795 = vmax.f32 %v791, %v794
          %v796 = vsub.f32 %v791, %v795
          %v797 = vmul.f32 %v796, 1.442695
          %v798 = vpow.pop %v797
          %800 = vset.pattern.permute.xlu0 0
          %801 = vperm.xlu0 %800, %v795
          %v802 = vpop.permute.xlu0 %801
          %v804 = vsub.f32 %v790, %v802
          %v805 = vmul.f32 %v804, 1.442695
          %v806 = vpow.pop %v805
          %v807 = vsel %vm710, %v806, 0.0
          %v808 = vld [vmem:[#allocation5] sm:$0xff]
          %v809 = vmul.f32 %v798, %v808
          %v810 = vsel %vm713, %v807, 0.0
          %811 = vadd.xlane.f32.xlu0 %v810
          %v812 = vpop.xlane.xlu0 %811
          %v813 = vadd.f32 %v809, %v812
          %vm814 = vcmask 7168
          %815 = vst.msk [vmem:[#allocation5] sm:$0xff] %vm814, %v813
          %v816 = vld [vmem:[#allocation6] sm:$0xff]
          %818 = vset.pattern.permute.xlu0 0
          %819 = vperm.xlu0 %818, %v798
          %v820 = vpop.permute.xlu0 %819
          %v822 = vmul.f32 %v820, %v816
          %823 = vrot.lane.b32.xlu0 %v712, 96
          %v824 = vpop.permute.xlu0 %823
          %v827 = vsel %vm713, %v807, 0
          %829 = vmatprep.subr.mxu0 0.0
          %830 = vmatpush1.msra.mxu0 %v824
          %831 = vmatprep.subr.mxu0 0.0
          %832 = vmatpush1.msra.mxu0 0.0
          %833 = vmatprep.subr.mxu0 0.0
          %834 = vmatpush1.msra.mxu0 0.0
          %835 = vmatprep.subr.mxu0 0.0
          %836 = vmatpush1.msra.mxu0 0.0
          %837 = vmatprep.subr.mxu0 0.0
          %838 = vmatpush1.msra.mxu0 0.0
          %839 = vmatprep.subr.mxu0 0.0
          %840 = vmatpush1.msra.mxu0 0.0
          %841 = vmatprep.subr.mxu0 0.0
          %842 = vmatpush1.msra.mxu0 0.0
          %843 = vmatprep.subr.mxu0 0.0
          %844 = vmatpush1.msra.mxu0 0.0
          %845 = vmatprep.subr.mxu0 0.0
          %846 = vmatpush1.msra.mxu0 0.0
          %847 = vmatprep.subr.mxu0 0.0
          %848 = vmatpush1.msra.mxu0 0.0
          %849 = vmatprep.subr.mxu0 0.0
          %850 = vmatpush1.msra.mxu0 0.0
          %851 = vmatprep.subr.mxu0 0.0
          %852 = vmatpush1.msra.mxu0 0.0
          %853 = vmatprep.subr.mxu0 0.0
          %854 = vmatpush1.msra.mxu0 0.0
          %855 = vmatprep.subr.mxu0 0.0
          %856 = vmatpush1.msra.mxu0 0.0
          %857 = vmatprep.subr.mxu0 0.0
          %858 = vmatpush1.msra.mxu0 0.0
          %859 = vmatprep.subr.mxu0 0.0
          %860 = vmatpush1.msra.mxu0 0.0
          %861 = vmatprep.subr.mxu0 0.0
          %862 = vmatpush1.msra.mxu0 0.0
          %863 = vmatprep.subr.mxu0 0.0
          %864 = vmatpush1.msra.mxu0 0.0
          %865 = vmatprep.subr.mxu0 0.0
          %866 = vmatpush1.msra.mxu0 0.0
          %867 = vmatprep.subr.mxu0 0.0
          %868 = vmatpush1.msra.mxu0 0.0
          %869 = vmatprep.subr.mxu0 0.0
          %870 = vmatpush1.msra.mxu0 0.0
          %871 = vmatprep.subr.mxu0 0.0
          %872 = vmatpush1.msra.mxu0 0.0
          %873 = vmatprep.subr.mxu0 0.0
          %874 = vmatpush1.msra.mxu0 0.0
          %875 = vmatprep.subr.mxu0 0.0
          %876 = vmatpush1.msra.mxu0 0.0
          %877 = vmatprep.subr.mxu0 0.0
          %878 = vmatpush1.msra.mxu0 0.0
          %879 = vmatprep.subr.mxu0 0.0
          %880 = vmatpush1.msra.mxu0 0.0
          %881 = vmatprep.subr.mxu0 0.0
          %882 = vmatpush1.msra.mxu0 0.0
          %883 = vmatprep.subr.mxu0 0.0
          %884 = vmatpush1.msra.mxu0 0.0
          %885 = vmatprep.subr.mxu0 0.0
          %886 = vmatpush1.msra.mxu0 0.0
          %887 = vmatprep.subr.mxu0 0.0
          %888 = vmatpush1.msra.mxu0 0.0
          %889 = vmatprep.subr.mxu0 0.0
          %890 = vmatpush1.msra.mxu0 0.0
          %891 = vmatprep.subr.mxu0 0.0
          %892 = vmatpush1.msra.mxu0 0.0
          %893 = vmatprep.mubr.f32.mxu0 0.0
          %894 = vmatmul.mubr.f32.gmra.mrb[0].mxu0 %v827
          %v895 = vpop.f32.mrb[0].mxu0
          %v896 = vadd.f32 0.0, %v895
          %v897 = vpop.f32.mrb[0].mxu0
          %898 = vdwg.mxu0
          %v899 = vadd.f32 %v822, %v896
          %900 = vst.msk [vmem:[#allocation6] sm:$0xff] %vm713, %v899
          %901 = vst.msk [vmem:[#allocation4] sm:$0xff] %vm814, %v795
          %v902 = vld [vmem:[#allocation2] sm:$0xff]
          %v903 = vld [vmem:[#allocation3] sm:$0xff]
          %905 = vrot.lane.b32.xlu0 %v902, 120
          %v906 = vpop.permute.xlu0 %905
          %908 = vrot.lane.b32.xlu0 %v903, 120
          %v909 = vpop.permute.xlu0 %908
          %v910 = vsel %vm713, %v906, 0
          %v912 = vsel %vm713, %v909, 0
          %914 = vmatprep.subr.mxu0 0.0
          %915 = vmatpush1.xpose.msra.mxu0 %v912
          %916 = vmatprep.subr.mxu0 0.0
          %917 = vmatpush1.xpose.msra.mxu0 0.0
          %918 = vmatprep.subr.mxu0 0.0
          %919 = vmatpush1.xpose.msra.mxu0 0.0
          %920 = vmatprep.subr.mxu0 0.0
          %921 = vmatpush1.xpose.msra.mxu0 0.0
          %922 = vmatprep.subr.mxu0 0.0
          %923 = vmatpush1.xpose.msra.mxu0 0.0
          %924 = vmatprep.subr.mxu0 0.0
          %925 = vmatpush1.xpose.msra.mxu0 0.0
          %926 = vmatprep.subr.mxu0 0.0
          %927 = vmatpush1.xpose.msra.mxu0 0.0
          %928 = vmatprep.subr.mxu0 0.0
          %929 = vmatpush1.xpose.msra.mxu0 0.0
          %930 = vmatprep.subr.mxu0 0.0
          %931 = vmatpush1.xpose.msra.mxu0 0.0
          %932 = vmatprep.subr.mxu0 0.0
          %933 = vmatpush1.xpose.msra.mxu0 0.0
          %934 = vmatprep.subr.mxu0 0.0
          %935 = vmatpush1.xpose.msra.mxu0 0.0
          %936 = vmatprep.subr.mxu0 0.0
          %937 = vmatpush1.xpose.msra.mxu0 0.0
          %938 = vmatprep.subr.mxu0 0.0
          %939 = vmatpush1.xpose.msra.mxu0 0.0
          %940 = vmatprep.subr.mxu0 0.0
          %941 = vmatpush1.xpose.msra.mxu0 0.0
          %942 = vmatprep.subr.mxu0 0.0
          %943 = vmatpush1.xpose.msra.mxu0 0.0
          %944 = vmatprep.subr.mxu0 0.0
          %945 = vmatpush1.xpose.msra.mxu0 0.0
          %946 = vmatprep.subr.mxu0 0.0
          %947 = vmatpush1.xpose.msra.mxu0 0.0
          %948 = vmatprep.subr.mxu0 0.0
          %949 = vmatpush1.xpose.msra.mxu0 0.0
          %950 = vmatprep.subr.mxu0 0.0
          %951 = vmatpush1.xpose.msra.mxu0 0.0
          %952 = vmatprep.subr.mxu0 0.0
          %953 = vmatpush1.xpose.msra.mxu0 0.0
          %954 = vmatprep.subr.mxu0 0.0
          %955 = vmatpush1.xpose.msra.mxu0 0.0
          %956 = vmatprep.subr.mxu0 0.0
          %957 = vmatpush1.xpose.msra.mxu0 0.0
          %958 = vmatprep.subr.mxu0 0.0
          %959 = vmatpush1.xpose.msra.mxu0 0.0
          %960 = vmatprep.subr.mxu0 0.0
          %961 = vmatpush1.xpose.msra.mxu0 0.0
          %962 = vmatprep.subr.mxu0 0.0
          %963 = vmatpush1.xpose.msra.mxu0 0.0
          %964 = vmatprep.subr.mxu0 0.0
          %965 = vmatpush1.xpose.msra.mxu0 0.0
          %966 = vmatprep.subr.mxu0 0.0
          %967 = vmatpush1.xpose.msra.mxu0 0.0
          %968 = vmatprep.subr.mxu0 0.0
          %969 = vmatpush1.xpose.msra.mxu0 0.0
          %970 = vmatprep.subr.mxu0 0.0
          %971 = vmatpush1.xpose.msra.mxu0 0.0
          %972 = vmatprep.subr.mxu0 0.0
          %973 = vmatpush1.xpose.msra.mxu0 0.0
          %974 = vmatprep.subr.mxu0 0.0
          %975 = vmatpush1.xpose.msra.mxu0 0.0
          %976 = vmatprep.subr.mxu0 0.0
          %977 = vmatpush1.xpose.msra.mxu0 0.0
          %978 = vmatprep.mubr.f32.mxu0 0.0
          %979 = vmatmul.mubr.f32.gmra.mrb[0].mxu0 %v910
          %v980 = vpop.f32.mrb[0].mxu0
          %v981 = vadd.f32 0.0, %v980
          %v982 = vpop.f32.mrb[0].mxu0
          %983 = vdwg.mxu0
          %v984 = vsel %vm710, %v981, -1e+30
          %s985 = scalar_lea.vmem [#allocation4], 8
          %v986 = vld [vmem:[%s985] sm:$0xff]
          %v987 = vsel %vm713, %v984, -inf
          %988 = vmax.xlane.f32.xlu0 %v987
          %v989 = vpop.xlane.xlu0 %988
          %v990 = vmax.f32 %v986, %v989
          %v991 = vsub.f32 %v986, %v990
          %v992 = vmul.f32 %v991, 1.442695
          %v993 = vpow.pop %v992
          %995 = vset.pattern.permute.xlu0 0
          %996 = vperm.xlu0 %995, %v990
          %v997 = vpop.permute.xlu0 %996
          %v999 = vsub.f32 %v984, %v997
          %v1000 = vmul.f32 %v999, 1.442695
          %v1001 = vpow.pop %v1000
          %v1002 = vsel %vm710, %v1001, 0.0
          %s1003 = scalar_lea.vmem [#allocation5], 8
          %v1004 = vld [vmem:[%s1003] sm:$0xff]
          %v1005 = vmul.f32 %v993, %v1004
          %v1006 = vsel %vm713, %v1002, 0.0
          %1007 = vadd.xlane.f32.xlu0 %v1006
          %v1008 = vpop.xlane.xlu0 %1007
          %v1009 = vadd.f32 %v1005, %v1008
          %1010 = vst.msk [vmem:[%s1003] sm:$0xff] %vm814, %v1009
          %v1011 = vld [vmem:[#allocation6] sm:$0xff]
          %1013 = vset.pattern.permute.xlu0 0
          %1014 = vperm.xlu0 %1013, %v993
          %v1015 = vpop.permute.xlu0 %1014
          %v1017 = vmul.f32 %v1015, %v1011
          %1018 = vrot.lane.b32.xlu0 %v903, 88
          %v1019 = vpop.permute.xlu0 %1018
          %v1022 = vsel %vm713, %v1002, 0
          %1024 = vmatprep.subr.mxu0 0.0
          %1025 = vmatpush1.msra.mxu0 %v1019
          %1026 = vmatprep.subr.mxu0 0.0
          %1027 = vmatpush1.msra.mxu0 0.0
          %1028 = vmatprep.subr.mxu0 0.0
          %1029 = vmatpush1.msra.mxu0 0.0
          %1030 = vmatprep.subr.mxu0 0.0
          %1031 = vmatpush1.msra.mxu0 0.0
          %1032 = vmatprep.subr.mxu0 0.0
          %1033 = vmatpush1.msra.mxu0 0.0
          %1034 = vmatprep.subr.mxu0 0.0
          %1035 = vmatpush1.msra.mxu0 0.0
          %1036 = vmatprep.subr.mxu0 0.0
          %1037 = vmatpush1.msra.mxu0 0.0
          %1038 = vmatprep.subr.mxu0 0.0
          %1039 = vmatpush1.msra.mxu0 0.0
          %1040 = vmatprep.subr.mxu0 0.0
          %1041 = vmatpush1.msra.mxu0 0.0
          %1042 = vmatprep.subr.mxu0 0.0
          %1043 = vmatpush1.msra.mxu0 0.0
          %1044 = vmatprep.subr.mxu0 0.0
          %1045 = vmatpush1.msra.mxu0 0.0
          %1046 = vmatprep.subr.mxu0 0.0
          %1047 = vmatpush1.msra.mxu0 0.0
          %1048 = vmatprep.subr.mxu0 0.0
          %1049 = vmatpush1.msra.mxu0 0.0
          %1050 = vmatprep.subr.mxu0 0.0
          %1051 = vmatpush1.msra.mxu0 0.0
          %1052 = vmatprep.subr.mxu0 0.0
          %1053 = vmatpush1.msra.mxu0 0.0
          %1054 = vmatprep.subr.mxu0 0.0
          %1055 = vmatpush1.msra.mxu0 0.0
          %1056 = vmatprep.subr.mxu0 0.0
          %1057 = vmatpush1.msra.mxu0 0.0
          %1058 = vmatprep.subr.mxu0 0.0
          %1059 = vmatpush1.msra.mxu0 0.0
          %1060 = vmatprep.subr.mxu0 0.0
          %1061 = vmatpush1.msra.mxu0 0.0
          %1062 = vmatprep.subr.mxu0 0.0
          %1063 = vmatpush1.msra.mxu0 0.0
          %1064 = vmatprep.subr.mxu0 0.0
          %1065 = vmatpush1.msra.mxu0 0.0
          %1066 = vmatprep.subr.mxu0 0.0
          %1067 = vmatpush1.msra.mxu0 0.0
          %1068 = vmatprep.subr.mxu0 0.0
          %1069 = vmatpush1.msra.mxu0 0.0
          %1070 = vmatprep.subr.mxu0 0.0
          %1071 = vmatpush1.msra.mxu0 0.0
          %1072 = vmatprep.subr.mxu0 0.0
          %1073 = vmatpush1.msra.mxu0 0.0
          %1074 = vmatprep.subr.mxu0 0.0
          %1075 = vmatpush1.msra.mxu0 0.0
          %1076 = vmatprep.subr.mxu0 0.0
          %1077 = vmatpush1.msra.mxu0 0.0
          %1078 = vmatprep.subr.mxu0 0.0
          %1079 = vmatpush1.msra.mxu0 0.0
          %1080 = vmatprep.subr.mxu0 0.0
          %1081 = vmatpush1.msra.mxu0 0.0
          %1082 = vmatprep.subr.mxu0 0.0
          %1083 = vmatpush1.msra.mxu0 0.0
          %1084 = vmatprep.subr.mxu0 0.0
          %1085 = vmatpush1.msra.mxu0 0.0
          %1086 = vmatprep.subr.mxu0 0.0
          %1087 = vmatpush1.msra.mxu0 0.0
          %1088 = vmatprep.mubr.f32.mxu0 0.0
          %1089 = vmatmul.mubr.f32.gmra.mrb[0].mxu0 %v1022
          %v1090 = vpop.f32.mrb[0].mxu0
          %v1091 = vadd.f32 0.0, %v1090
          %v1092 = vpop.f32.mrb[0].mxu0
          %1093 = vdwg.mxu0
          %1095 = vrot.lane.b32.xlu0 %v1091, 8
          %v1096 = vpop.permute.xlu0 %1095
          %v1098 = vadd.f32 %v1017, %v1096
          %vm1099 = vcmask 130112
          %1100 = vst.msk [vmem:[#allocation6] sm:$0xff] %vm1099, %v1098
          %1101 = vst.msk [vmem:[%s985] sm:$0xff] %vm814, %v990
          %v1102 = vld [vmem:[#allocation2] sm:$0xff]
          %v1103 = vld [vmem:[#allocation3] sm:$0xff]
          %1105 = vrot.lane.b32.xlu0 %v1102, 112
          %v1106 = vpop.permute.xlu0 %1105
          %1108 = vrot.lane.b32.xlu0 %v1103, 112
          %v1109 = vpop.permute.xlu0 %1108
          %v1110 = vsel %vm713, %v1106, 0
          %v1112 = vsel %vm713, %v1109, 0
          %1114 = vmatprep.subr.mxu0 0.0
          %1115 = vmatpush1.xpose.msra.mxu0 %v1112
          %1116 = vmatprep.subr.mxu0 0.0
          %1117 = vmatpush1.xpose.msra.mxu0 0.0
          %1118 = vmatprep.subr.mxu0 0.0
          %1119 = vmatpush1.xpose.msra.mxu0 0.0
          %1120 = vmatprep.subr.mxu0 0.0
          %1121 = vmatpush1.xpose.msra.mxu0 0.0
          %1122 = vmatprep.subr.mxu0 0.0
          %1123 = vmatpush1.xpose.msra.mxu0 0.0
          %1124 = vmatprep.subr.mxu0 0.0
          %1125 = vmatpush1.xpose.msra.mxu0 0.0
          %1126 = vmatprep.subr.mxu0 0.0
          %1127 = vmatpush1.xpose.msra.mxu0 0.0
          %1128 = vmatprep.subr.mxu0 0.0
          %1129 = vmatpush1.xpose.msra.mxu0 0.0
          %1130 = vmatprep.subr.mxu0 0.0
          %1131 = vmatpush1.xpose.msra.mxu0 0.0
          %1132 = vmatprep.subr.mxu0 0.0
          %1133 = vmatpush1.xpose.msra.mxu0 0.0
          %1134 = vmatprep.subr.mxu0 0.0
          %1135 = vmatpush1.xpose.msra.mxu0 0.0
          %1136 = vmatprep.subr.mxu0 0.0
          %1137 = vmatpush1.xpose.msra.mxu0 0.0
          %1138 = vmatprep.subr.mxu0 0.0
          %1139 = vmatpush1.xpose.msra.mxu0 0.0
          %1140 = vmatprep.subr.mxu0 0.0
          %1141 = vmatpush1.xpose.msra.mxu0 0.0
          %1142 = vmatprep.subr.mxu0 0.0
          %1143 = vmatpush1.xpose.msra.mxu0 0.0
          %1144 = vmatprep.subr.mxu0 0.0
          %1145 = vmatpush1.xpose.msra.mxu0 0.0
          %1146 = vmatprep.subr.mxu0 0.0
          %1147 = vmatpush1.xpose.msra.mxu0 0.0
          %1148 = vmatprep.subr.mxu0 0.0
          %1149 = vmatpush1.xpose.msra.mxu0 0.0
          %1150 = vmatprep.subr.mxu0 0.0
          %1151 = vmatpush1.xpose.msra.mxu0 0.0
          %1152 = vmatprep.subr.mxu0 0.0
          %1153 = vmatpush1.xpose.msra.mxu0 0.0
          %1154 = vmatprep.subr.mxu0 0.0
          %1155 = vmatpush1.xpose.msra.mxu0 0.0
          %1156 = vmatprep.subr.mxu0 0.0
          %1157 = vmatpush1.xpose.msra.mxu0 0.0
          %1158 = vmatprep.subr.mxu0 0.0
          %1159 = vmatpush1.xpose.msra.mxu0 0.0
          %1160 = vmatprep.subr.mxu0 0.0
          %1161 = vmatpush1.xpose.msra.mxu0 0.0
          %1162 = vmatprep.subr.mxu0 0.0
          %1163 = vmatpush1.xpose.msra.mxu0 0.0
          %1164 = vmatprep.subr.mxu0 0.0
          %1165 = vmatpush1.xpose.msra.mxu0 0.0
          %1166 = vmatprep.subr.mxu0 0.0
          %1167 = vmatpush1.xpose.msra.mxu0 0.0
          %1168 = vmatprep.subr.mxu0 0.0
          %1169 = vmatpush1.xpose.msra.mxu0 0.0
          %1170 = vmatprep.subr.mxu0 0.0
          %1171 = vmatpush1.xpose.msra.mxu0 0.0
          %1172 = vmatprep.subr.mxu0 0.0
          %1173 = vmatpush1.xpose.msra.mxu0 0.0
          %1174 = vmatprep.subr.mxu0 0.0
          %1175 = vmatpush1.xpose.msra.mxu0 0.0
          %1176 = vmatprep.subr.mxu0 0.0
          %1177 = vmatpush1.xpose.msra.mxu0 0.0
          %1178 = vmatprep.mubr.f32.mxu0 0.0
          %1179 = vmatmul.mubr.f32.gmra.mrb[0].mxu0 %v1110
          %v1180 = vpop.f32.mrb[0].mxu0
          %v1181 = vadd.f32 0.0, %v1180
          %v1182 = vpop.f32.mrb[0].mxu0
          %1183 = vdwg.mxu0
          %v1184 = vsel %vm710, %v1181, -1e+30
          %s1185 = scalar_lea.vmem [#allocation4], 16
          %v1186 = vld [vmem:[%s1185] sm:$0xff]
          %v1187 = vsel %vm713, %v1184, -inf
          %1188 = vmax.xlane.f32.xlu0 %v1187
          %v1189 = vpop.xlane.xlu0 %1188
          %v1190 = vmax.f32 %v1186, %v1189
          %v1191 = vsub.f32 %v1186, %v1190
          %v1192 = vmul.f32 %v1191, 1.442695
          %v1193 = vpow.pop %v1192
          %1195 = vset.pattern.permute.xlu0 0
          %1196 = vperm.xlu0 %1195, %v1190
          %v1197 = vpop.permute.xlu0 %1196
          %v1199 = vsub.f32 %v1184, %v1197
          %v1200 = vmul.f32 %v1199, 1.442695
          %v1201 = vpow.pop %v1200
          %v1202 = vsel %vm710, %v1201, 0.0
          %s1203 = scalar_lea.vmem [#allocation5], 16
          %v1204 = vld [vmem:[%s1203] sm:$0xff]
          %v1205 = vmul.f32 %v1193, %v1204
          %v1206 = vsel %vm713, %v1202, 0.0
          %1207 = vadd.xlane.f32.xlu0 %v1206
          %v1208 = vpop.xlane.xlu0 %1207
          %v1209 = vadd.f32 %v1205, %v1208
          %1210 = vst.msk [vmem:[%s1203] sm:$0xff] %vm814, %v1209
          %v1211 = vld [vmem:[#allocation6] sm:$0xff]
          %1213 = vset.pattern.permute.xlu0 0
          %1214 = vperm.xlu0 %1213, %v1193
          %v1215 = vpop.permute.xlu0 %1214
          %v1217 = vmul.f32 %v1215, %v1211
          %1218 = vrot.lane.b32.xlu0 %v1103, 80
          %v1219 = vpop.permute.xlu0 %1218
          %v1222 = vsel %vm713, %v1202, 0
          %1224 = vmatprep.subr.mxu0 0.0
          %1225 = vmatpush1.msra.mxu0 %v1219
          %1226 = vmatprep.subr.mxu0 0.0
          %1227 = vmatpush1.msra.mxu0 0.0
          %1228 = vmatprep.subr.mxu0 0.0
          %1229 = vmatpush1.msra.mxu0 0.0
          %1230 = vmatprep.subr.mxu0 0.0
          %1231 = vmatpush1.msra.mxu0 0.0
          %1232 = vmatprep.subr.mxu0 0.0
          %1233 = vmatpush1.msra.mxu0 0.0
          %1234 = vmatprep.subr.mxu0 0.0
          %1235 = vmatpush1.msra.mxu0 0.0
          %1236 = vmatprep.subr.mxu0 0.0
          %1237 = vmatpush1.msra.mxu0 0.0
          %1238 = vmatprep.subr.mxu0 0.0
          %1239 = vmatpush1.msra.mxu0 0.0
          %1240 = vmatprep.subr.mxu0 0.0
          %1241 = vmatpush1.msra.mxu0 0.0
          %1242 = vmatprep.subr.mxu0 0.0
          %1243 = vmatpush1.msra.mxu0 0.0
          %1244 = vmatprep.subr.mxu0 0.0
          %1245 = vmatpush1.msra.mxu0 0.0
          %1246 = vmatprep.subr.mxu0 0.0
          %1247 = vmatpush1.msra.mxu0 0.0
          %1248 = vmatprep.subr.mxu0 0.0
          %1249 = vmatpush1.msra.mxu0 0.0
          %1250 = vmatprep.subr.mxu0 0.0
          %1251 = vmatpush1.msra.mxu0 0.0
          %1252 = vmatprep.subr.mxu0 0.0
          %1253 = vmatpush1.msra.mxu0 0.0
          %1254 = vmatprep.subr.mxu0 0.0
          %1255 = vmatpush1.msra.mxu0 0.0
          %1256 = vmatprep.subr.mxu0 0.0
          %1257 = vmatpush1.msra.mxu0 0.0
          %1258 = vmatprep.subr.mxu0 0.0
          %1259 = vmatpush1.msra.mxu0 0.0
          %1260 = vmatprep.subr.mxu0 0.0
          %1261 = vmatpush1.msra.mxu0 0.0
          %1262 = vmatprep.subr.mxu0 0.0
          %1263 = vmatpush1.msra.mxu0 0.0
          %1264 = vmatprep.subr.mxu0 0.0
          %1265 = vmatpush1.msra.mxu0 0.0
          %1266 = vmatprep.subr.mxu0 0.0
          %1267 = vmatpush1.msra.mxu0 0.0
          %1268 = vmatprep.subr.mxu0 0.0
          %1269 = vmatpush1.msra.mxu0 0.0
          %1270 = vmatprep.subr.mxu0 0.0
          %1271 = vmatpush1.msra.mxu0 0.0
          %1272 = vmatprep.subr.mxu0 0.0
          %1273 = vmatpush1.msra.mxu0 0.0
          %1274 = vmatprep.subr.mxu0 0.0
          %1275 = vmatpush1.msra.mxu0 0.0
          %1276 = vmatprep.subr.mxu0 0.0
          %1277 = vmatpush1.msra.mxu0 0.0
          %1278 = vmatprep.subr.mxu0 0.0
          %1279 = vmatpush1.msra.mxu0 0.0
          %1280 = vmatprep.subr.mxu0 0.0
          %1281 = vmatpush1.msra.mxu0 0.0
          %1282 = vmatprep.subr.mxu0 0.0
          %1283 = vmatpush1.msra.mxu0 0.0
          %1284 = vmatprep.subr.mxu0 0.0
          %1285 = vmatpush1.msra.mxu0 0.0
          %1286 = vmatprep.subr.mxu0 0.0
          %1287 = vmatpush1.msra.mxu0 0.0
          %1288 = vmatprep.mubr.f32.mxu0 0.0
          %1289 = vmatmul.mubr.f32.gmra.mrb[0].mxu0 %v1222
          %v1290 = vpop.f32.mrb[0].mxu0
          %v1291 = vadd.f32 0.0, %v1290
          %v1292 = vpop.f32.mrb[0].mxu0
          %1293 = vdwg.mxu0
          %1295 = vrot.lane.b32.xlu0 %v1291, 16
          %v1296 = vpop.permute.xlu0 %1295
          %v1298 = vadd.f32 %v1217, %v1296
          %vm1299 = vcmask 195712
          %1300 = vst.msk [vmem:[#allocation6] sm:$0xff] %vm1299, %v1298
          %1301 = vst.msk [vmem:[%s1185] sm:$0xff] %vm814, %v1190
          %v1302 = vld [vmem:[#allocation2] sm:$0xff]
          %v1303 = vld [vmem:[#allocation3] sm:$0xff]
          %1305 = vrot.lane.b32.xlu0 %v1302, 104
          %v1306 = vpop.permute.xlu0 %1305
          %1308 = vrot.lane.b32.xlu0 %v1303, 104
          %v1309 = vpop.permute.xlu0 %1308
          %v1310 = vsel %vm713, %v1306, 0
          %v1312 = vsel %vm713, %v1309, 0
          %1314 = vmatprep.subr.mxu0 0.0
          %1315 = vmatpush1.xpose.msra.mxu0 %v1312
          %1316 = vmatprep.subr.mxu0 0.0
          %1317 = vmatpush1.xpose.msra.mxu0 0.0
          %1318 = vmatprep.subr.mxu0 0.0
          %1319 = vmatpush1.xpose.msra.mxu0 0.0
          %1320 = vmatprep.subr.mxu0 0.0
          %1321 = vmatpush1.xpose.msra.mxu0 0.0
          %1322 = vmatprep.subr.mxu0 0.0
          %1323 = vmatpush1.xpose.msra.mxu0 0.0
          %1324 = vmatprep.subr.mxu0 0.0
          %1325 = vmatpush1.xpose.msra.mxu0 0.0
          %1326 = vmatprep.subr.mxu0 0.0
          %1327 = vmatpush1.xpose.msra.mxu0 0.0
          %1328 = vmatprep.subr.mxu0 0.0
          %1329 = vmatpush1.xpose.msra.mxu0 0.0
          %1330 = vmatprep.subr.mxu0 0.0
          %1331 = vmatpush1.xpose.msra.mxu0 0.0
          %1332 = vmatprep.subr.mxu0 0.0
          %1333 = vmatpush1.xpose.msra.mxu0 0.0
          %1334 = vmatprep.subr.mxu0 0.0
          %1335 = vmatpush1.xpose.msra.mxu0 0.0
          %1336 = vmatprep.subr.mxu0 0.0
          %1337 = vmatpush1.xpose.msra.mxu0 0.0
          %1338 = vmatprep.subr.mxu0 0.0
          %1339 = vmatpush1.xpose.msra.mxu0 0.0
          %1340 = vmatprep.subr.mxu0 0.0
          %1341 = vmatpush1.xpose.msra.mxu0 0.0
          %1342 = vmatprep.subr.mxu0 0.0
          %1343 = vmatpush1.xpose.msra.mxu0 0.0
          %1344 = vmatprep.subr.mxu0 0.0
          %1345 = vmatpush1.xpose.msra.mxu0 0.0
          %1346 = vmatprep.subr.mxu0 0.0
          %1347 = vmatpush1.xpose.msra.mxu0 0.0
          %1348 = vmatprep.subr.mxu0 0.0
          %1349 = vmatpush1.xpose.msra.mxu0 0.0
          %1350 = vmatprep.subr.mxu0 0.0
          %1351 = vmatpush1.xpose.msra.mxu0 0.0
          %1352 = vmatprep.subr.mxu0 0.0
          %1353 = vmatpush1.xpose.msra.mxu0 0.0
          %1354 = vmatprep.subr.mxu0 0.0
          %1355 = vmatpush1.xpose.msra.mxu0 0.0
          %1356 = vmatprep.subr.mxu0 0.0
          %1357 = vmatpush1.xpose.msra.mxu0 0.0
          %1358 = vmatprep.subr.mxu0 0.0
          %1359 = vmatpush1.xpose.msra.mxu0 0.0
          %1360 = vmatprep.subr.mxu0 0.0
          %1361 = vmatpush1.xpose.msra.mxu0 0.0
          %1362 = vmatprep.subr.mxu0 0.0
          %1363 = vmatpush1.xpose.msra.mxu0 0.0
          %1364 = vmatprep.subr.mxu0 0.0
          %1365 = vmatpush1.xpose.msra.mxu0 0.0
          %1366 = vmatprep.subr.mxu0 0.0
          %1367 = vmatpush1.xpose.msra.mxu0 0.0
          %1368 = vmatprep.subr.mxu0 0.0
          %1369 = vmatpush1.xpose.msra.mxu0 0.0
          %1370 = vmatprep.subr.mxu0 0.0
          %1371 = vmatpush1.xpose.msra.mxu0 0.0
          %1372 = vmatprep.subr.mxu0 0.0
          %1373 = vmatpush1.xpose.msra.mxu0 0.0
          %1374 = vmatprep.subr.mxu0 0.0
          %1375 = vmatpush1.xpose.msra.mxu0 0.0
          %1376 = vmatprep.subr.mxu0 0.0
          %1377 = vmatpush1.xpose.msra.mxu0 0.0
          %1378 = vmatprep.mubr.f32.mxu0 0.0
          %1379 = vmatmul.mubr.f32.gmra.mrb[0].mxu0 %v1310
          %v1380 = vpop.f32.mrb[0].mxu0
          %v1381 = vadd.f32 0.0, %v1380
          %v1382 = vpop.f32.mrb[0].mxu0
          %1383 = vdwg.mxu0
          %v1384 = vsel %vm710, %v1381, -1e+30
          %s1385 = scalar_lea.vmem [#allocation4], 24
          %v1386 = vld [vmem:[%s1385] sm:$0xff]
          %v1387 = vsel %vm713, %v1384, -inf
          %1388 = vmax.xlane.f32.xlu0 %v1387
          %v1389 = vpop.xlane.xlu0 %1388
          %v1390 = vmax.f32 %v1386, %v1389
          %v1391 = vsub.f32 %v1386, %v1390
          %v1392 = vmul.f32 %v1391, 1.442695
          %v1393 = vpow.pop %v1392
          %1395 = vset.pattern.permute.xlu0 0
          %1396 = vperm.xlu0 %1395, %v1390
          %v1397 = vpop.permute.xlu0 %1396
          %v1399 = vsub.f32 %v1384, %v1397
          %v1400 = vmul.f32 %v1399, 1.442695
          %v1401 = vpow.pop %v1400
          %v1402 = vsel %vm710, %v1401, 0.0
          %s1403 = scalar_lea.vmem [#allocation5], 24
          %v1404 = vld [vmem:[%s1403] sm:$0xff]
          %v1405 = vmul.f32 %v1393, %v1404
          %v1406 = vsel %vm713, %v1402, 0.0
          %1407 = vadd.xlane.f32.xlu0 %v1406
          %v1408 = vpop.xlane.xlu0 %1407
          %v1409 = vadd.f32 %v1405, %v1408
          %1410 = vst.msk [vmem:[%s1403] sm:$0xff] %vm814, %v1409
          %v1411 = vld [vmem:[#allocation6] sm:$0xff]
          %1413 = vset.pattern.permute.xlu0 0
          %1414 = vperm.xlu0 %1413, %v1393
          %v1415 = vpop.permute.xlu0 %1414
          %v1417 = vmul.f32 %v1415, %v1411
          %1418 = vrot.lane.b32.xlu0 %v1303, 72
          %v1419 = vpop.permute.xlu0 %1418
          %v1422 = vsel %vm713, %v1402, 0
          %1424 = vmatprep.subr.mxu0 0.0
          %1425 = vmatpush1.msra.mxu0 %v1419
          %1426 = vmatprep.subr.mxu0 0.0
          %1427 = vmatpush1.msra.mxu0 0.0
          %1428 = vmatprep.subr.mxu0 0.0
          %1429 = vmatpush1.msra.mxu0 0.0
          %1430 = vmatprep.subr.mxu0 0.0
          %1431 = vmatpush1.msra.mxu0 0.0
          %1432 = vmatprep.subr.mxu0 0.0
          %1433 = vmatpush1.msra.mxu0 0.0
          %1434 = vmatprep.subr.mxu0 0.0
          %1435 = vmatpush1.msra.mxu0 0.0
          %1436 = vmatprep.subr.mxu0 0.0
          %1437 = vmatpush1.msra.mxu0 0.0
          %1438 = vmatprep.subr.mxu0 0.0
          %1439 = vmatpush1.msra.mxu0 0.0
          %1440 = vmatprep.subr.mxu0 0.0
          %1441 = vmatpush1.msra.mxu0 0.0
          %1442 = vmatprep.subr.mxu0 0.0
          %1443 = vmatpush1.msra.mxu0 0.0
          %1444 = vmatprep.subr.mxu0 0.0
          %1445 = vmatpush1.msra.mxu0 0.0
          %1446 = vmatprep.subr.mxu0 0.0
          %1447 = vmatpush1.msra.mxu0 0.0
          %1448 = vmatprep.subr.mxu0 0.0
          %1449 = vmatpush1.msra.mxu0 0.0
          %1450 = vmatprep.subr.mxu0 0.0
          %1451 = vmatpush1.msra.mxu0 0.0
          %1452 = vmatprep.subr.mxu0 0.0
          %1453 = vmatpush1.msra.mxu0 0.0
          %1454 = vmatprep.subr.mxu0 0.0
          %1455 = vmatpush1.msra.mxu0 0.0
          %1456 = vmatprep.subr.mxu0 0.0
          %1457 = vmatpush1.msra.mxu0 0.0
          %1458 = vmatprep.subr.mxu0 0.0
          %1459 = vmatpush1.msra.mxu0 0.0
          %1460 = vmatprep.subr.mxu0 0.0
          %1461 = vmatpush1.msra.mxu0 0.0
          %1462 = vmatprep.subr.mxu0 0.0
          %1463 = vmatpush1.msra.mxu0 0.0
          %1464 = vmatprep.subr.mxu0 0.0
          %1465 = vmatpush1.msra.mxu0 0.0
          %1466 = vmatprep.subr.mxu0 0.0
          %1467 = vmatpush1.msra.mxu0 0.0
          %1468 = vmatprep.subr.mxu0 0.0
          %1469 = vmatpush1.msra.mxu0 0.0
          %1470 = vmatprep.subr.mxu0 0.0
          %1471 = vmatpush1.msra.mxu0 0.0
          %1472 = vmatprep.subr.mxu0 0.0
          %1473 = vmatpush1.msra.mxu0 0.0
          %1474 = vmatprep.subr.mxu0 0.0
          %1475 = vmatpush1.msra.mxu0 0.0
          %1476 = vmatprep.subr.mxu0 0.0
          %1477 = vmatpush1.msra.mxu0 0.0
          %1478 = vmatprep.subr.mxu0 0.0
          %1479 = vmatpush1.msra.mxu0 0.0
          %1480 = vmatprep.subr.mxu0 0.0
          %1481 = vmatpush1.msra.mxu0 0.0
          %1482 = vmatprep.subr.mxu0 0.0
          %1483 = vmatpush1.msra.mxu0 0.0
          %1484 = vmatprep.subr.mxu0 0.0
          %1485 = vmatpush1.msra.mxu0 0.0
          %1486 = vmatprep.subr.mxu0 0.0
          %1487 = vmatpush1.msra.mxu0 0.0
          %1488 = vmatprep.mubr.f32.mxu0 0.0
          %1489 = vmatmul.mubr.f32.gmra.mrb[0].mxu0 %v1422
          %v1490 = vpop.f32.mrb[0].mxu0
          %v1491 = vadd.f32 0.0, %v1490
          %v1492 = vpop.f32.mrb[0].mxu0
          %1493 = vdwg.mxu0
          %1495 = vrot.lane.b32.xlu0 %v1491, 24
          %v1496 = vpop.permute.xlu0 %1495
          %v1498 = vadd.f32 %v1417, %v1496
          %vm1499 = vcmask 261312
          %1500 = vst.msk [vmem:[#allocation6] sm:$0xff] %vm1499, %v1498
          %1501 = vst.msk [vmem:[%s1385] sm:$0xff] %vm814, %v1390
        $region84: #{tpu_custom_call.1} parent=55 // pred_fallthru
          _
        // Predicated region
        $region85: #{tpu_custom_call.1} parent=55 // pred_check
          %p1502 = pneg %p455
        $region86: #{tpu_custom_call.1} parent=55 // pred_check_branch
          %1504 = sbr.rel (%p1502) target = $region88
        $region87: #{tpu_custom_call.1} parent=55 // pred_region
          %v1505 = vld [vmem:[#allocation6] sm:$0xff]
          %v1506 = vld [vmem:[#allocation5] sm:$0xff]
          %v1507 = vrcp.pop %v1506
          %v1508 = vmul.f32 1.0, %v1507
          %1510 = vset.pattern.permute.xlu0 0
          %1511 = vperm.xlu0 %1510, %v1508
          %v1512 = vpop.permute.xlu0 %1511
          %v1514 = vmul.f32 %v1505, %v1512
          %vm1515 = vcmask 64512
          %1516 = vst.msk [vmem:[#allocation6] sm:$0xff] %vm1515, %v1514
          %v1517 = vld [vmem:[#allocation6] sm:$0xff]
          %s1518 = scalar_lea.vmem [#allocation5], 8
          %v1519 = vld [vmem:[%s1518] sm:$0xff]
          %v1520 = vrcp.pop %v1519
          %v1521 = vmul.f32 1.0, %v1520
          %1523 = vset.pattern.permute.xlu0 0
          %1524 = vperm.xlu0 %1523, %v1521
          %v1525 = vpop.permute.xlu0 %1524
          %v1527 = vmul.f32 %v1517, %v1525
          %vm1528 = vcmask 130112
          %1529 = vst.msk [vmem:[#allocation6] sm:$0xff] %vm1528, %v1527
          %v1530 = vld [vmem:[#allocation6] sm:$0xff]
          %s1531 = scalar_lea.vmem [#allocation5], 16
          %v1532 = vld [vmem:[%s1531] sm:$0xff]
          %v1533 = vrcp.pop %v1532
          %v1534 = vmul.f32 1.0, %v1533
          %1536 = vset.pattern.permute.xlu0 0
          %1537 = vperm.xlu0 %1536, %v1534
          %v1538 = vpop.permute.xlu0 %1537
          %v1540 = vmul.f32 %v1530, %v1538
          %vm1541 = vcmask 195712
          %1542 = vst.msk [vmem:[#allocation6] sm:$0xff] %vm1541, %v1540
          %v1543 = vld [vmem:[#allocation6] sm:$0xff]
          %s1544 = scalar_lea.vmem [#allocation5], 24
          %v1545 = vld [vmem:[%s1544] sm:$0xff]
          %v1546 = vrcp.pop %v1545
          %v1547 = vmul.f32 1.0, %v1546
          %1549 = vset.pattern.permute.xlu0 0
          %1550 = vperm.xlu0 %1549, %v1547
          %v1551 = vpop.permute.xlu0 %1550
          %v1553 = vmul.f32 %v1543, %v1551
          %vm1554 = vcmask 261312
          %1555 = vst.msk [vmem:[#allocation6] sm:$0xff] %vm1554, %v1553
          %v1556 = vld [vmem:[#allocation6] sm:$0xff]
          %v1557 = vld [vmem:[#allocation15] sm:$0xff]
          %v1558 = vld [vmem:[#allocation15 + $0x8] sm:$0xff]
          %v1559 = vld [vmem:[#allocation15 + $0x10] sm:$0xff]
          %v1560 = vld [vmem:[#allocation15 + $0x18] sm:$0xff]
          %v1561 = vld [vmem:[%s8] sm:$0x1]
          %v1563 = vlaneseq
          %v1564 = vshrl.u32 %v1563, 7
          %v1565 = vsub.s32 0, %v1564
          %v1566 = vrot.slane %v1561, %v1565
          %vm1568 = vcmask 261120
          %v1570 = vsel %vm1568, %v1556, 0
          %1572 = vmatprep.subr.mxu0 0.0
          %1573 = vmatpush1.msra.mxu0 %v1557
          %1574 = vmatprep.subr.mxu0 0.0
          %1575 = vmatpush1.msra.mxu0 %v1558
          %1576 = vmatprep.subr.mxu0 0.0
          %1577 = vmatpush1.msra.mxu0 %v1559
          %1578 = vmatprep.subr.mxu0 0.0
          %1579 = vmatpush1.msra.mxu0 %v1560
          %1580 = vmatprep.subr.mxu0 0.0
          %1581 = vmatpush1.msra.mxu0 0.0
          %1582 = vmatprep.subr.mxu0 0.0
          %1583 = vmatpush1.msra.mxu0 0.0
          %1584 = vmatprep.subr.mxu0 0.0
          %1585 = vmatpush1.msra.mxu0 0.0
          %1586 = vmatprep.subr.mxu0 0.0
          %1587 = vmatpush1.msra.mxu0 0.0
          %1588 = vmatprep.subr.mxu0 0.0
          %1589 = vmatpush1.msra.mxu0 0.0
          %1590 = vmatprep.subr.mxu0 0.0
          %1591 = vmatpush1.msra.mxu0 0.0
          %1592 = vmatprep.subr.mxu0 0.0
          %1593 = vmatpush1.msra.mxu0 0.0
          %1594 = vmatprep.subr.mxu0 0.0
          %1595 = vmatpush1.msra.mxu0 0.0
          %1596 = vmatprep.subr.mxu0 0.0
          %1597 = vmatpush1.msra.mxu0 0.0
          %1598 = vmatprep.subr.mxu0 0.0
          %1599 = vmatpush1.msra.mxu0 0.0
          %1600 = vmatprep.subr.mxu0 0.0
          %1601 = vmatpush1.msra.mxu0 0.0
          %1602 = vmatprep.subr.mxu0 0.0
          %1603 = vmatpush1.msra.mxu0 0.0
          %1604 = vmatprep.subr.mxu0 0.0
          %1605 = vmatpush1.msra.mxu0 0.0
          %1606 = vmatprep.subr.mxu0 0.0
          %1607 = vmatpush1.msra.mxu0 0.0
          %1608 = vmatprep.subr.mxu0 0.0
          %1609 = vmatpush1.msra.mxu0 0.0
          %1610 = vmatprep.subr.mxu0 0.0
          %1611 = vmatpush1.msra.mxu0 0.0
          %1612 = vmatprep.subr.mxu0 0.0
          %1613 = vmatpush1.msra.mxu0 0.0
          %1614 = vmatprep.subr.mxu0 0.0
          %1615 = vmatpush1.msra.mxu0 0.0
          %1616 = vmatprep.subr.mxu0 0.0
          %1617 = vmatpush1.msra.mxu0 0.0
          %1618 = vmatprep.subr.mxu0 0.0
          %1619 = vmatpush1.msra.mxu0 0.0
          %1620 = vmatprep.subr.mxu0 0.0
          %1621 = vmatpush1.msra.mxu0 0.0
          %1622 = vmatprep.subr.mxu0 0.0
          %1623 = vmatpush1.msra.mxu0 0.0
          %1624 = vmatprep.subr.mxu0 0.0
          %1625 = vmatpush1.msra.mxu0 0.0
          %1626 = vmatprep.subr.mxu0 0.0
          %1627 = vmatpush1.msra.mxu0 0.0
          %1628 = vmatprep.subr.mxu0 0.0
          %1629 = vmatpush1.msra.mxu0 0.0
          %1630 = vmatprep.subr.mxu0 0.0
          %1631 = vmatpush1.msra.mxu0 0.0
          %1632 = vmatprep.subr.mxu0 0.0
          %1633 = vmatpush1.msra.mxu0 0.0
          %1634 = vmatprep.subr.mxu0 0.0
          %1635 = vmatpush1.msra.mxu0 0.0
          %1636 = vmatprep.mubr.f32.mxu0 0.0
          %1637 = vmatmul.mubr.f32.gmra.mrb[0].mxu0 %v1570
          %v1638 = vpop.f32.mrb[0].mxu0
          %v1639 = vadd.f32 %v1566, %v1638
          %v1640 = vpop.f32.mrb[0].mxu0
          %1641 = vdwg.mxu0
          %v1642 = vld [vmem:[%s394] sm:$0xff]
          %v1643 = vadd.f32 %v1642, %v1639
          %1644 = vst.msk [vmem:[%s454] sm:$0xff] %vm1568, %v1643
        $region88: #{tpu_custom_call.1} parent=55 // pred_fallthru
          _
        %s1645 = sand.u32 %s262, 1
        %s1646 = scalar_lea.sflag [#allocation9], %s1645
        %s1647 = sand.u32 %s262, 1
        %s1648 = smul.addr %s1647, 8
        %s1649 = scalar_lea.vmem [#allocation16], %s1648
        // Predicated region
        $region89: #{tpu_custom_call.1} parent=55 // pred_check
          %p1650 = pneg %p272
        $region90: #{tpu_custom_call.1} parent=55 // pred_check_branch
          %1652 = sbr.rel (%p1650) target = $region92
        $region91: #{tpu_custom_call.1} parent=55 // pred_region
          %s1654 = ssub.s32 128, 128
          %1655 = vsyncadd %s1646, %s1654
          %s1656 = sadd.s32 %s36, %s35
          %s1657 = smul.addr %s1656, 128
          %s1658 = scalar_lea.hbm %s9, %s1657
          %s1660 = sshll.u32 %s1649, 4
          %s1661 = int_to_ptr.vmem [resolvable:$true] %s1660
          %1663 = dma.vmem_to_hbm [thread:$0]  %s1661, 128, %s1658, %s1646
        $region92: #{tpu_custom_call.1} parent=55 // pred_fallthru
          _
      $region56: #{tpu_custom_call.1} parent=5 // pred_fallthru
        _
      %p1664 = scmp.le.s32.totalorder 2, %s25
      // Predicated region
      $region93: #{tpu_custom_call.1} parent=5 // pred_check
        %p1665 = pneg %p1664
      $region94: #{tpu_custom_call.1} parent=5 // pred_check_branch
        %1667 = sbr.rel (%p1665) target = $region96
      $region95: #{tpu_custom_call.1} parent=5 // pred_region
        %s1668 = ssub.s32 %s25, 2
        // Predicated region
        $region97: #{tpu_custom_call.1} parent=95 // pred_check
          %p1669 = pneg %p278
        $region98: #{tpu_custom_call.1} parent=95 // pred_check_branch
          %1671 = sbr.rel (%p1669) target = $region100
        $region99: #{tpu_custom_call.1} parent=95 // pred_region
          %s1672 = sand.u32 %s263, 1
          %s1673 = scalar_lea.sflag [#allocation9], %s1672
          %s1674 = sand.u32 %s263, 1
          %s1675 = smul.addr %s1674, 8
          %s1676 = scalar_lea.vmem [#allocation16], %s1675
          %1677 = dma.done %s1673, 128
        $region100: #{tpu_custom_call.1} parent=95 // pred_fallthru
          _
      $region96: #{tpu_custom_call.1} parent=5 // pred_fallthru
        _
    $region6: #{tpu_custom_call.1} parent=1 // loop_footer
      %s29 = sadd.s32 1, %s25
    $region7: #{tpu_custom_call.1} parent=1 // loop_footer_branch
      %24 = sbr.rel target = $region3
    $region8: #{tpu_custom_call.1} parent=1 // loop_exit
      _
    %1678 = vsyncpa [#allocation8], 1
    %s1679 = scalar_lea.sflag [#allocation8], 1
    %1680 = vsyncpa %s1679, 1
    %1681 = vsyncpa [#allocation11], 1
    %s1682 = scalar_lea.sflag [#allocation11], 1
    %1683 = vsyncpa %s1682, 1
    %1684 = vsyncpa [#allocation14], 1
    %1685 = vsyncpa [#allocation9], 1
    %s1686 = scalar_lea.sflag [#allocation9], 1
    %1687 = vsyncpa %s1686, 1

</llo_original>
